<compile_context>
chip_gen: v7x
topology: tpu7x:2x2x1
jax: 0.10.0
libtpu: 0.0.40
codegen_flags: <defaults>
</compile_context>

<pallas_src>
import jax
import jax.numpy as jnp
from jax.experimental import pallas as pl
from jax.experimental.pallas import tpu as pltpu

# ----------------------------- model dims -----------------------------------
INPUT_DIM = 16
HIDDEN = 32          # hidden_dim
FFN = 2048           # nn.TransformerEncoderLayer default dim_feedforward
OUT_DIM = 2
OUT_PAD = 128        # lane-dense padded output width
LN_EPS = 1e-5


def _layernorm(h, gamma, beta):
    mu = jnp.mean(h, axis=-1, keepdims=True)
    var = jnp.mean((h - mu) ** 2, axis=-1, keepdims=True)
    return (h - mu) * jax.lax.rsqrt(var + LN_EPS) * gamma + beta


# ------------------------------- kernel --------------------------------------
def saint_kernel(
    x_ref,                       # (TILE_B, INPUT_DIM)  f32
    w_pre_ref,                   # (INPUT_DIM, HIDDEN)  bf16  fused emb/attn/residual
    w_f1_ref,                    # (HIDDEN, FFN)        bf16
    b_f1_ref,                    # (1, FFN)             bf16
    w_f2_ref,                    # (FFN, HIDDEN)        bf16
    w_m1_ref,                    # (HIDDEN, HIDDEN)     bf16
    w_m2p_ref,                   # (HIDDEN, OUT_PAD)    bf16  zero-padded cols
    b_m2p_ref,                   # (1, OUT_PAD)         f32
    small_ref,                   # (8, HIDDEN)          f32   packed biases / LN
    out_ref,                     # (TILE_B, OUT_PAD)    f32
):
    small = small_ref[...]
    b_pre = small[0:1]
    g1, be1 = small[1:2], small[2:3]
    b_f2 = small[3:4]
    g2, be2 = small[4:5], small[5:6]
    b_m1 = small[6:7]

    # fused embedding + self-attention + residual -> one (16, 32) matmul, then norm1
    pre = jnp.dot(x_ref[...].astype(jnp.bfloat16), w_pre_ref[...],
                  preferred_element_type=jnp.float32) + b_pre
    h1 = _layernorm(pre, g1, be1)

    # feed-forward: bf16 weights + bf16 (TILE_B, FFN) intermediate, f32 accumulation
    ff = jnp.dot(h1.astype(jnp.bfloat16), w_f1_ref[...],
                 preferred_element_type=jnp.float32).astype(jnp.bfloat16)
    ff = jnp.maximum(ff + b_f1_ref[...], 0.0)            # bias + ReLU in bf16
    ff2 = jnp.dot(ff, w_f2_ref[...],
                  preferred_element_type=jnp.float32) + b_f2
    h2 = _layernorm(h1 + ff2, g2, be2)                    # norm2 (f32)

    # MLP head (bf16 weights, last Linear padded to lane-dense 128 columns)
    m = jnp.maximum(
        jnp.dot(h2.astype(jnp.bfloat16), w_m1_ref[...],
                preferred_element_type=jnp.float32) + b_m1, 0.0)
    out_ref[...] = (
        jnp.dot(m.astype(jnp.bfloat16), w_m2p_ref[...],
                preferred_element_type=jnp.float32) + b_m2p_ref[...])


# ------------------------------ wrapper ---------------------------------------
def _round_up(n, m):
    return ((n + m - 1) // m) * m


def _device_kind():
    try:
        return jax.devices()[0].device_kind.lower()
    except Exception:
        return ""


def _choose_tiling(batch):
    """Pad the batch only to a multiple of 16 and right-size the tile."""
    kind = _device_kind()
    max_tile = 256 if "v5" in kind else 512
    b_pad = _round_up(max(batch, 1), 16)
    if b_pad <= max_tile:
        tile_b = b_pad
        # v7x has 2 TensorCores: keep >=2 grid steps when there is enough work.
        if "v7" in kind and b_pad >= 32:
            tile_b = b_pad // 2
    else:
        tile_b = max_tile
        b_pad = _round_up(batch, tile_b)
    return b_pad, tile_b


def prepare_params(p):
    """Fuse / pack / cast parameters for the kernel (done once per call)."""
    w_vo = p["w_v"] @ p["w_o"]                            # (H, H)
    b_vo = p["b_v"] @ p["w_o"] + p["b_o"]                 # (1, H)
    fold = jnp.eye(HIDDEN, dtype=jnp.float32) + w_vo      # I + W_vo
    w_pre = (p["w_emb"] @ fold).astype(jnp.bfloat16)      # (IN, H)
    b_pre = p["b_emb"] @ fold + b_vo                      # (1, H) f32
    small = jnp.concatenate(
        [b_pre, p["ln1_g"], p["ln1_b"], p["b_f2"],
         p["ln2_g"], p["ln2_b"], p["b_m1"],
         jnp.zeros((1, HIDDEN), jnp.float32)], axis=0)    # (8, H)
    w_m2p = jnp.zeros((HIDDEN, OUT_PAD), jnp.float32).at[:, :OUT_DIM].set(
        p["w_m2"]).astype(jnp.bfloat16)
    b_m2p = jnp.zeros((1, OUT_PAD), jnp.float32).at[:, :OUT_DIM].set(p["b_m2"])
    return dict(
        w_pre=w_pre,
        w_f1=p["w_f1"].astype(jnp.bfloat16),
        b_f1=p["b_f1"].astype(jnp.bfloat16),
        w_f2=p["w_f2"].astype(jnp.bfloat16),
        w_m1=p["w_m1"].astype(jnp.bfloat16),
        w_m2p=w_m2p,
        b_m2p=b_m2p,
        small=small,
    )


def saint_forward(x, params, tile_b=None):
    B = x.shape[0]
    b_pad, auto_tile = _choose_tiling(B)
    if tile_b is None:
        tile_b = auto_tile
    b_pad = _round_up(b_pad, tile_b)
    if b_pad != B:
        x = jnp.pad(x, ((0, b_pad - B), (0, 0)))          # pad batch to tile multiple

    f = prepare_params(params)
    weights = (f["w_pre"], f["w_f1"], f["b_f1"], f["w_f2"],
               f["w_m1"], f["w_m2p"], f["b_m2p"], f["small"])

    # weights: full-array blocks, constant index_map => VMEM-resident across steps
    w_specs = [pl.BlockSpec(w.shape, lambda i: (0, 0)) for w in weights]
    in_specs = [pl.BlockSpec((tile_b, INPUT_DIM), lambda i: (i, 0))] + w_specs
    out_spec = pl.BlockSpec((tile_b, OUT_PAD), lambda i: (i, 0))

    flops_per_row = 2 * (INPUT_DIM * HIDDEN + 2 * HIDDEN * FFN
                         + HIDDEN * HIDDEN + HIDDEN * OUT_PAD)
    weight_bytes = sum(int(w.size) * w.dtype.itemsize for w in weights)
    cost = pl.CostEstimate(
        flops=flops_per_row * b_pad,
        transcendentals=2 * b_pad,                        # 2 rsqrt per row
        bytes_accessed=weight_bytes + int(x.size) * 4 + b_pad * OUT_PAD * 4,
    )

    out = pl.pallas_call(
        saint_kernel,
        out_shape=jax.ShapeDtypeStruct((b_pad, OUT_PAD), jnp.float32),
        grid=(b_pad // tile_b,),
        in_specs=in_specs,
        out_specs=out_spec,
        compiler_params=pltpu.CompilerParams(dimension_semantics=("parallel",)),
        cost_estimate=cost,
    )(x, *weights)
    return out[:B, :OUT_DIM]


# ------------------------------ references ------------------------------------
def saint_reference(x, params):
    """Pure-JAX reference with identical fusion / bf16 precision as the kernel."""
    f = prepare_params(params)
    s = f["small"]
    pre = jnp.dot(x.astype(jnp.bfloat16), f["w_pre"],
                  preferred_element_type=jnp.float32) + s[0:1]
    h1 = _layernorm(pre, s[1:2], s[2:3])
    ff = jnp.dot(h1.astype(jnp.bfloat16), f["w_f1"],
                 preferred_element_type=jnp.float32).astype(jnp.bfloat16)
    ff = jnp.maximum(ff + f["b_f1"], 0.0)
    ff2 = jnp.dot(ff, f["w_f2"], preferred_element_type=jnp.float32) + s[3:4]
    h2 = _layernorm(h1 + ff2, s[4:5], s[5:6])
    m = jnp.maximum(jnp.dot(h2.astype(jnp.bfloat16), f["w_m1"],
                            preferred_element_type=jnp.float32) + s[6:7], 0.0)
    out = jnp.dot(m.astype(jnp.bfloat16), f["w_m2p"],
                  preferred_element_type=jnp.float32) + f["b_m2p"]
    return out[:, :OUT_DIM]


def saint_reference_f32(x, p):
    """Module-structural pure-f32 reference (embedding -> attention -> FFN -> MLP)."""
    h = x @ p["w_emb"] + p["b_emb"]
    attn = (h @ p["w_v"] + p["b_v"]) @ p["w_o"] + p["b_o"]   # seq_len==1 attention
    h1 = _layernorm(h + attn, p["ln1_g"], p["ln1_b"])
    ff = jnp.maximum(h1 @ p["w_f1"] + p["b_f1"], 0.0)
    h2 = _layernorm(h1 + ff @ p["w_f2"] + p["b_f2"], p["ln2_g"], p["ln2_b"])
    m = jnp.maximum(h2 @ p["w_m1"] + p["b_m1"], 0.0)
    return m @ p["w_m2"] + p["b_m2"]


def init_params(key):
    """Deterministic synthetic parameters (biases stored as (1, N) rows)."""
    ks = jax.random.split(key, 10)

    def lin(k, fan_in, fan_out):
        scale = 1.0 / jnp.sqrt(fan_in)
        kw, kb = jax.random.split(k)
        w = jax.random.uniform(kw, (fan_in, fan_out), jnp.float32, -scale, scale)
        b = jax.random.uniform(kb, (1, fan_out), jnp.float32, -scale, scale)
        return w, b

    p = {}
    p["w_emb"], p["b_emb"] = lin(ks[0], INPUT_DIM, HIDDEN)
    p["w_v"], p["b_v"] = lin(ks[1], HIDDEN, HIDDEN)        # V slice of in_proj
    p["w_o"], p["b_o"] = lin(ks[2], HIDDEN, HIDDEN)        # attn out_proj
    p["ln1_g"] = jnp.ones((1, HIDDEN), jnp.float32)
    p["ln1_b"] = jnp.zeros((1, HIDDEN), jnp.float32)
    p["w_f1"], p["b_f1"] = lin(ks[3], HIDDEN, FFN)
    p["w_f2"], p["b_f2"] = lin(ks[4], FFN, HIDDEN)
    p["ln2_g"] = jnp.ones((1, HIDDEN), jnp.float32)
    p["ln2_b"] = jnp.zeros((1, HIDDEN), jnp.float32)
    p["w_m1"], p["b_m1"] = lin(ks[5], HIDDEN, HIDDEN)
    p["w_m2"], p["b_m2"] = lin(ks[6], HIDDEN, OUT_DIM)
    return p


if __name__ == "__main__":
    key = jax.random.PRNGKey(0)
    kx, kp = jax.random.split(key)

    B = 8
    x = jax.random.normal(kx, (B, INPUT_DIM), jnp.float32)
    params = init_params(kp)

    out = saint_forward(x, params)
    out = jax.block_until_ready(out)
    assert out.shape == (B, OUT_DIM)
    assert bool(jnp.all(jnp.isfinite(out)))

    # Tight check against the matched-precision (fused, bf16-weight) reference.
    ref = saint_reference(x, params)
    assert jnp.allclose(out, ref, atol=1e-2, rtol=1e-2), "mismatch vs fused reference"

    # Loose sanity check against the true f32, module-structural reference.
    # TODO(synk): the ~bf16-sized deviation here is an intentional precision trade-off.
    ref32 = saint_reference_f32(x, params)
    assert float(jnp.max(jnp.abs(out - ref32))) < 0.25, "gross mismatch vs f32 reference"

    print("KERNEL_OK")
</pallas_src>

<mosaic_0001>
module attributes {stable_mosaic.version = 11 : i64} {
  func.func @saint_kernel(%arg0: i32, %arg1: memref<16x16xf32, #tpu.memory_space<vmem>>, %arg2: memref<16x32xbf16, #tpu.memory_space<vmem>>, %arg3: memref<32x2048xbf16, #tpu.memory_space<vmem>>, %arg4: memref<1x2048xbf16, #tpu.memory_space<vmem>>, %arg5: memref<2048x32xbf16, #tpu.memory_space<vmem>>, %arg6: memref<32x32xbf16, #tpu.memory_space<vmem>>, %arg7: memref<32x128xbf16, #tpu.memory_space<vmem>>, %arg8: memref<1x128xf32, #tpu.memory_space<vmem>>, %arg9: memref<8x32xf32, #tpu.memory_space<vmem>>, %arg10: memref<16x128xf32, #tpu.memory_space<vmem>>) attributes {dimension_semantics = [#tpu.dimension_semantics<parallel>], iteration_bounds = array<i64: 1>, scalar_prefetch = 0 : i64, scratch_operands = 0 : i64, tpu.core_type = #tpu.core_type<tc>, window_params = [{transform_indices = @transform_0, window_bounds = array<i64: 16, 16>}, {pipeline_mode = #tpu.pipeline_mode<synchronous>, transform_indices = @transform_1, window_bounds = array<i64: 16, 32>}, {pipeline_mode = #tpu.pipeline_mode<synchronous>, transform_indices = @transform_2, window_bounds = array<i64: 32, 2048>}, {pipeline_mode = #tpu.pipeline_mode<synchronous>, transform_indices = @transform_3, window_bounds = array<i64: 1, 2048>}, {pipeline_mode = #tpu.pipeline_mode<synchronous>, transform_indices = @transform_4, window_bounds = array<i64: 2048, 32>}, {pipeline_mode = #tpu.pipeline_mode<synchronous>, transform_indices = @transform_5, window_bounds = array<i64: 32, 32>}, {pipeline_mode = #tpu.pipeline_mode<synchronous>, transform_indices = @transform_6, window_bounds = array<i64: 32, 128>}, {pipeline_mode = #tpu.pipeline_mode<synchronous>, transform_indices = @transform_7, window_bounds = array<i64: 1, 128>}, {pipeline_mode = #tpu.pipeline_mode<synchronous>, transform_indices = @transform_8, window_bounds = array<i64: 8, 32>}, {transform_indices = @transform_9, window_bounds = array<i64: 16, 128>}]} {
    %c0 = arith.constant 0 : index
    %c0_0 = arith.constant 0 : index
    %0 = vector.load %arg9[%c0, %c0_0] : memref<8x32xf32, #tpu.memory_space<vmem>>, vector<8x32xf32>
    %1 = vector.extract_strided_slice %0 {offsets = [0, 0], sizes = [1, 32], strides = [1, 1]} : vector<8x32xf32> to vector<1x32xf32>
    %2 = vector.extract_strided_slice %0 {offsets = [1, 0], sizes = [1, 32], strides = [1, 1]} : vector<8x32xf32> to vector<1x32xf32>
    %3 = vector.extract_strided_slice %0 {offsets = [2, 0], sizes = [1, 32], strides = [1, 1]} : vector<8x32xf32> to vector<1x32xf32>
    %4 = vector.extract_strided_slice %0 {offsets = [3, 0], sizes = [1, 32], strides = [1, 1]} : vector<8x32xf32> to vector<1x32xf32>
    %5 = vector.extract_strided_slice %0 {offsets = [4, 0], sizes = [1, 32], strides = [1, 1]} : vector<8x32xf32> to vector<1x32xf32>
    %6 = vector.extract_strided_slice %0 {offsets = [5, 0], sizes = [1, 32], strides = [1, 1]} : vector<8x32xf32> to vector<1x32xf32>
    %7 = vector.extract_strided_slice %0 {offsets = [6, 0], sizes = [1, 32], strides = [1, 1]} : vector<8x32xf32> to vector<1x32xf32>
    %c0_1 = arith.constant 0 : index
    %c0_2 = arith.constant 0 : index
    %8 = vector.load %arg1[%c0_1, %c0_2] : memref<16x16xf32, #tpu.memory_space<vmem>>, vector<16x16xf32>
    %9 = arith.truncf %8 : vector<16x16xf32> to vector<16x16xbf16>
    %c0_3 = arith.constant 0 : index
    %c0_4 = arith.constant 0 : index
    %10 = vector.load %arg2[%c0_3, %c0_4] : memref<16x32xbf16, #tpu.memory_space<vmem>>, vector<16x32xbf16>
    %cst = arith.constant dense<0.000000e+00> : vector<16x32xf32>
    %11 = tpu.matmul %9, %10, %cst {dimension_numbers = #tpu.dot_dimension_numbers<[1], [0], [0], [1], [0, 0, 1, 1], [], []>} : vector<16x16xbf16>, vector<16x32xbf16>, vector<16x32xf32> -> vector<16x32xf32>
    %12 = vector.broadcast %1 : vector<1x32xf32> to vector<16x32xf32>
    %13 = arith.addf %11, %12 : vector<16x32xf32>
    %cst_5 = arith.constant dense<0.000000e+00> : vector<16xf32>
    %14 = vector.multi_reduction <add>, %13, %cst_5 [1] : vector<16x32xf32> to vector<16xf32>
    %15 = vector.shape_cast %14 : vector<16xf32> to vector<16x1xf32>
    %cst_6 = arith.constant 3.200000e+01 : f32
    %16 = vector.broadcast %cst_6 : f32 to vector<16x1xf32>
    %17 = arith.divf %15, %16 : vector<16x1xf32>
    %18 = vector.broadcast %17 : vector<16x1xf32> to vector<16x32xf32>
    %19 = arith.subf %13, %18 : vector<16x32xf32>
    %20 = arith.mulf %19, %19 : vector<16x32xf32>
    %cst_7 = arith.constant dense<0.000000e+00> : vector<16xf32>
    %21 = vector.multi_reduction <add>, %20, %cst_7 [1] : vector<16x32xf32> to vector<16xf32>
    %22 = vector.shape_cast %21 : vector<16xf32> to vector<16x1xf32>
    %cst_8 = arith.constant 3.200000e+01 : f32
    %23 = vector.broadcast %cst_8 : f32 to vector<16x1xf32>
    %24 = arith.divf %22, %23 : vector<16x1xf32>
    %25 = vector.broadcast %17 : vector<16x1xf32> to vector<16x32xf32>
    %26 = arith.subf %13, %25 : vector<16x32xf32>
    %cst_9 = arith.constant 9.99999974E-6 : f32
    %27 = vector.broadcast %cst_9 : f32 to vector<16x1xf32>
    %28 = arith.addf %24, %27 : vector<16x1xf32>
    %29 = math.rsqrt %28 : vector<16x1xf32>
    %30 = vector.broadcast %29 : vector<16x1xf32> to vector<16x32xf32>
    %31 = arith.mulf %26, %30 : vector<16x32xf32>
    %32 = vector.broadcast %2 : vector<1x32xf32> to vector<16x32xf32>
    %33 = arith.mulf %31, %32 : vector<16x32xf32>
    %34 = vector.broadcast %3 : vector<1x32xf32> to vector<16x32xf32>
    %35 = arith.addf %33, %34 : vector<16x32xf32>
    %36 = arith.truncf %35 : vector<16x32xf32> to vector<16x32xbf16>
    %c0_10 = arith.constant 0 : index
    %c0_11 = arith.constant 0 : index
    %37 = vector.load %arg3[%c0_10, %c0_11] : memref<32x2048xbf16, #tpu.memory_space<vmem>>, vector<32x2048xbf16>
    %cst_12 = arith.constant dense<0.000000e+00> : vector<16x2048xf32>
    %38 = tpu.matmul %36, %37, %cst_12 {dimension_numbers = #tpu.dot_dimension_numbers<[1], [0], [0], [1], [0, 0, 1, 1], [], []>} : vector<16x32xbf16>, vector<32x2048xbf16>, vector<16x2048xf32> -> vector<16x2048xf32>
    %39 = arith.truncf %38 : vector<16x2048xf32> to vector<16x2048xbf16>
    %c0_13 = arith.constant 0 : index
    %c0_14 = arith.constant 0 : index
    %40 = vector.load %arg4[%c0_13, %c0_14] : memref<1x2048xbf16, #tpu.memory_space<vmem>>, vector<1x2048xbf16>
    %41 = vector.broadcast %40 : vector<1x2048xbf16> to vector<16x2048xbf16>
    %42 = arith.addf %39, %41 : vector<16x2048xbf16>
    %cst_15 = arith.constant 0.000000e+00 : bf16
    %43 = vector.broadcast %cst_15 : bf16 to vector<16x2048xbf16>
    %44 = arith.maximumf %42, %43 : vector<16x2048xbf16>
    %c0_16 = arith.constant 0 : index
    %c0_17 = arith.constant 0 : index
    %45 = vector.load %arg5[%c0_16, %c0_17] : memref<2048x32xbf16, #tpu.memory_space<vmem>>, vector<2048x32xbf16>
    %cst_18 = arith.constant dense<0.000000e+00> : vector<16x32xf32>
    %46 = tpu.matmul %44, %45, %cst_18 {dimension_numbers = #tpu.dot_dimension_numbers<[1], [0], [0], [1], [0, 0, 1, 1], [], []>} : vector<16x2048xbf16>, vector<2048x32xbf16>, vector<16x32xf32> -> vector<16x32xf32>
    %47 = vector.broadcast %4 : vector<1x32xf32> to vector<16x32xf32>
    %48 = arith.addf %46, %47 : vector<16x32xf32>
    %49 = arith.addf %35, %48 : vector<16x32xf32>
    %cst_19 = arith.constant dense<0.000000e+00> : vector<16xf32>
    %50 = vector.multi_reduction <add>, %49, %cst_19 [1] : vector<16x32xf32> to vector<16xf32>
    %51 = vector.shape_cast %50 : vector<16xf32> to vector<16x1xf32>
    %cst_20 = arith.constant 3.200000e+01 : f32
    %52 = vector.broadcast %cst_20 : f32 to vector<16x1xf32>
    %53 = arith.divf %51, %52 : vector<16x1xf32>
    %54 = vector.broadcast %53 : vector<16x1xf32> to vector<16x32xf32>
    %55 = arith.subf %49, %54 : vector<16x32xf32>
    %56 = arith.mulf %55, %55 : vector<16x32xf32>
    %cst_21 = arith.constant dense<0.000000e+00> : vector<16xf32>
    %57 = vector.multi_reduction <add>, %56, %cst_21 [1] : vector<16x32xf32> to vector<16xf32>
    %58 = vector.shape_cast %57 : vector<16xf32> to vector<16x1xf32>
    %cst_22 = arith.constant 3.200000e+01 : f32
    %59 = vector.broadcast %cst_22 : f32 to vector<16x1xf32>
    %60 = arith.divf %58, %59 : vector<16x1xf32>
    %61 = vector.broadcast %53 : vector<16x1xf32> to vector<16x32xf32>
    %62 = arith.subf %49, %61 : vector<16x32xf32>
    %cst_23 = arith.constant 9.99999974E-6 : f32
    %63 = vector.broadcast %cst_23 : f32 to vector<16x1xf32>
    %64 = arith.addf %60, %63 : vector<16x1xf32>
    %65 = math.rsqrt %64 : vector<16x1xf32>
    %66 = vector.broadcast %65 : vector<16x1xf32> to vector<16x32xf32>
    %67 = arith.mulf %62, %66 : vector<16x32xf32>
    %68 = vector.broadcast %5 : vector<1x32xf32> to vector<16x32xf32>
    %69 = arith.mulf %67, %68 : vector<16x32xf32>
    %70 = vector.broadcast %6 : vector<1x32xf32> to vector<16x32xf32>
    %71 = arith.addf %69, %70 : vector<16x32xf32>
    %72 = arith.truncf %71 : vector<16x32xf32> to vector<16x32xbf16>
    %c0_24 = arith.constant 0 : index
    %c0_25 = arith.constant 0 : index
    %73 = vector.load %arg6[%c0_24, %c0_25] : memref<32x32xbf16, #tpu.memory_space<vmem>>, vector<32x32xbf16>
    %cst_26 = arith.constant dense<0.000000e+00> : vector<16x32xf32>
    %74 = tpu.matmul %72, %73, %cst_26 {dimension_numbers = #tpu.dot_dimension_numbers<[1], [0], [0], [1], [0, 0, 1, 1], [], []>} : vector<16x32xbf16>, vector<32x32xbf16>, vector<16x32xf32> -> vector<16x32xf32>
    %75 = vector.broadcast %7 : vector<1x32xf32> to vector<16x32xf32>
    %76 = arith.addf %74, %75 : vector<16x32xf32>
    %cst_27 = arith.constant 0.000000e+00 : f32
    %77 = vector.broadcast %cst_27 : f32 to vector<16x32xf32>
    %78 = arith.maximumf %76, %77 : vector<16x32xf32>
    %79 = arith.truncf %78 : vector<16x32xf32> to vector<16x32xbf16>
    %c0_28 = arith.constant 0 : index
    %c0_29 = arith.constant 0 : index
    %80 = vector.load %arg7[%c0_28, %c0_29] : memref<32x128xbf16, #tpu.memory_space<vmem>>, vector<32x128xbf16>
    %cst_30 = arith.constant dense<0.000000e+00> : vector<16x128xf32>
    %81 = tpu.matmul %79, %80, %cst_30 {dimension_numbers = #tpu.dot_dimension_numbers<[1], [0], [0], [1], [0, 0, 1, 1], [], []>} : vector<16x32xbf16>, vector<32x128xbf16>, vector<16x128xf32> -> vector<16x128xf32>
    %c0_31 = arith.constant 0 : index
    %c0_32 = arith.constant 0 : index
    %82 = vector.load %arg8[%c0_31, %c0_32] : memref<1x128xf32, #tpu.memory_space<vmem>>, vector<1x128xf32>
    %83 = vector.broadcast %82 : vector<1x128xf32> to vector<16x128xf32>
    %84 = arith.addf %81, %83 : vector<16x128xf32>
    %c0_33 = arith.constant 0 : index
    %c0_34 = arith.constant 0 : index
    %85 = vector.load %arg10[%c0_33, %c0_34] : memref<16x128xf32, #tpu.memory_space<vmem>>, vector<16x128xf32>
    tpu.vector_store %arg10[%c0_33, %c0_34], %84 {strides = array<i32>} : memref<16x128xf32, #tpu.memory_space<vmem>>, vector<16x128xf32>,
    return
  }
  func.func @transform_0(%arg0: i32) -> (i32, i32) {
    %c0_i32 = arith.constant 0 : i32
    %c0_i32_0 = arith.constant 0 : i32
    return %arg0, %c0_i32 : i32, i32
  }
  func.func @transform_1(%arg0: i32) -> (i32, i32) {
    %c0_i32 = arith.constant 0 : i32
    %c0_i32_0 = arith.constant 0 : i32
    %c0_i32_1 = arith.constant 0 : i32
    return %c0_i32, %c0_i32_0 : i32, i32
  }
  func.func @transform_2(%arg0: i32) -> (i32, i32) {
    %c0_i32 = arith.constant 0 : i32
    %c0_i32_0 = arith.constant 0 : i32
    %c0_i32_1 = arith.constant 0 : i32
    return %c0_i32, %c0_i32_0 : i32, i32
  }
  func.func @transform_3(%arg0: i32) -> (i32, i32) {
    %c0_i32 = arith.constant 0 : i32
    %c0_i32_0 = arith.constant 0 : i32
    %c0_i32_1 = arith.constant 0 : i32
    return %c0_i32, %c0_i32_0 : i32, i32
  }
  func.func @transform_4(%arg0: i32) -> (i32, i32) {
    %c0_i32 = arith.constant 0 : i32
    %c0_i32_0 = arith.constant 0 : i32
    %c0_i32_1 = arith.constant 0 : i32
    return %c0_i32, %c0_i32_0 : i32, i32
  }
  func.func @transform_5(%arg0: i32) -> (i32, i32) {
    %c0_i32 = arith.constant 0 : i32
    %c0_i32_0 = arith.constant 0 : i32
    %c0_i32_1 = arith.constant 0 : i32
    return %c0_i32, %c0_i32_0 : i32, i32
  }
  func.func @transform_6(%arg0: i32) -> (i32, i32) {
    %c0_i32 = arith.constant 0 : i32
    %c0_i32_0 = arith.constant 0 : i32
    %c0_i32_1 = arith.constant 0 : i32
    return %c0_i32, %c0_i32_0 : i32, i32
  }
  func.func @transform_7(%arg0: i32) -> (i32, i32) {
    %c0_i32 = arith.constant 0 : i32
    %c0_i32_0 = arith.constant 0 : i32
    %c0_i32_1 = arith.constant 0 : i32
    return %c0_i32, %c0_i32_0 : i32, i32
  }
  func.func @transform_8(%arg0: i32) -> (i32, i32) {
    %c0_i32 = arith.constant 0 : i32
    %c0_i32_0 = arith.constant 0 : i32
    %c0_i32_1 = arith.constant 0 : i32
    return %c0_i32, %c0_i32_0 : i32, i32
  }
  func.func @transform_9(%arg0: i32) -> (i32, i32) {
    %c0_i32 = arith.constant 0 : i32
    %c0_i32_0 = arith.constant 0 : i32
    return %arg0, %c0_i32 : i32, i32
  }
}

</mosaic_0001>

<llo_original>
// kernel: tpu_custom_call.1
$region0: #{tpu_custom_call.1}
  #allocation0 [shape = 'u32[]', space=smem, size = 0x4, offset = 0x4, fixed_abs, tag = 'smem constant byte address 0x4 - core index']
  #allocation1 [shape = 'u32[144,128]{1,0:T(1,128)}', space=vmem, size = 0x12000, scoped, tag = 'internal scratch']
  %s0 = inlined_call_operand.vmem [shape: f32[16,16], index: 0, kind: input, shape index: {}]
  %s1 = inlined_call_operand.vmem [shape: bf16[16,32], index: 1, kind: input, shape index: {}]
  %s2 = inlined_call_operand.vmem [shape: bf16[32,2048], index: 2, kind: input, shape index: {}]
  %s3 = inlined_call_operand.vmem [shape: bf16[1,2048], index: 3, kind: input, shape index: {}]
  %s4 = inlined_call_operand.vmem [shape: bf16[2048,32], index: 4, kind: input, shape index: {}]
  %s5 = inlined_call_operand.vmem [shape: bf16[32,32], index: 5, kind: input, shape index: {}]
  %s6 = inlined_call_operand.vmem [shape: bf16[32,128], index: 6, kind: input, shape index: {}]
  %s7 = inlined_call_operand.vmem [shape: f32[1,128], index: 7, kind: input, shape index: {}]
  %s8 = inlined_call_operand.vmem [shape: f32[8,32], index: 8, kind: input, shape index: {}]
  %s9 = inlined_call_operand.hbm [shape: f32[16,128], index: 9, kind: output, shape index: {}]
  %s10 = sld [smem:[#allocation0]]
  $region46: #{tpu_custom_call.1} parent=0
    _
  %s12 = ssub.s32 1, %s10
  %s13 = scalar_select 0, %s12, %s10
  $region1: #{tpu_custom_call.1} parent=0
    #allocation2 [shape = 'u8[8192]{0}', space=vmem, size = 0x2000, scoped, tag = 'output window, operand 0, single buffered']
    #allocation3 [shape = 's32[1]{0}', space=sflag, size = 0x4, scoped, tag = 'scoped memory for tpu_custom_call.1']
    %14 = vsyncpa [#allocation3], 0
    // Predicated region
    $region2: #{tpu_custom_call.1} parent=1 // pred_check
      _
    $region3: #{tpu_custom_call.1} parent=1 // pred_check_branch
      %16 = sbr.rel (0) target = $region5
    $region4: #{tpu_custom_call.1} parent=1 // pred_region
      _
    $region5: #{tpu_custom_call.1} parent=1 // pred_fallthru
      _
    // Predicated region
    $region6: #{tpu_custom_call.1} parent=1 // pred_check
      _
    $region7: #{tpu_custom_call.1} parent=1 // pred_check_branch
      %18 = sbr.rel (0) target = $region9
    $region8: #{tpu_custom_call.1} parent=1 // pred_region
      _
    $region9: #{tpu_custom_call.1} parent=1 // pred_fallthru
      _
    // Predicated region
    $region10: #{tpu_custom_call.1} parent=1 // pred_check
      _
    $region11: #{tpu_custom_call.1} parent=1 // pred_check_branch
      %20 = sbr.rel (0) target = $region13
    $region12: #{tpu_custom_call.1} parent=1 // pred_region
      _
    $region13: #{tpu_custom_call.1} parent=1 // pred_fallthru
      _
    // Predicated region
    $region14: #{tpu_custom_call.1} parent=1 // pred_check
      _
    $region15: #{tpu_custom_call.1} parent=1 // pred_check_branch
      %22 = sbr.rel (0) target = $region17
    $region16: #{tpu_custom_call.1} parent=1 // pred_region
      _
    $region17: #{tpu_custom_call.1} parent=1 // pred_fallthru
      _
    // Predicated region
    $region18: #{tpu_custom_call.1} parent=1 // pred_check
      _
    $region19: #{tpu_custom_call.1} parent=1 // pred_check_branch
      %24 = sbr.rel (0) target = $region21
    $region20: #{tpu_custom_call.1} parent=1 // pred_region
      _
    $region21: #{tpu_custom_call.1} parent=1 // pred_fallthru
      _
    // Predicated region
    $region22: #{tpu_custom_call.1} parent=1 // pred_check
      _
    $region23: #{tpu_custom_call.1} parent=1 // pred_check_branch
      %26 = sbr.rel (0) target = $region25
    $region24: #{tpu_custom_call.1} parent=1 // pred_region
      _
    $region25: #{tpu_custom_call.1} parent=1 // pred_fallthru
      _
    // Predicated region
    $region26: #{tpu_custom_call.1} parent=1 // pred_check
      _
    $region27: #{tpu_custom_call.1} parent=1 // pred_check_branch
      %28 = sbr.rel (0) target = $region29
    $region28: #{tpu_custom_call.1} parent=1 // pred_region
      _
    $region29: #{tpu_custom_call.1} parent=1 // pred_fallthru
      _
    // Predicated region
    $region30: #{tpu_custom_call.1} parent=1 // pred_check
      _
    $region31: #{tpu_custom_call.1} parent=1 // pred_check_branch
      %30 = sbr.rel (0) target = $region33
    $region32: #{tpu_custom_call.1} parent=1 // pred_region
      _
    $region33: #{tpu_custom_call.1} parent=1 // pred_fallthru
      _
    // Predicated region
    $region34: #{tpu_custom_call.1} parent=1 // pred_check
      _
    $region35: #{tpu_custom_call.1} parent=1 // pred_check_branch
      %32 = sbr.rel (0) target = $region37
    $region36: #{tpu_custom_call.1} parent=1 // pred_region
      _
    $region37: #{tpu_custom_call.1} parent=1 // pred_fallthru
      _
    %v34 = vld [vmem:[%s8] sm:$0xff]
    %v35 = vld [vmem:[%s0] sm:$0xff]
    %v36 = vld [vmem:[%s0 + $0x8] sm:$0xff]
    %v37 = vpack.c.bf16 %v36, %v35
    %v38 = vld [vmem:[%s1] sm:$0xf]
    %v39 = vld [vmem:[%s1 + $0x4] sm:$0xf]
    %v40 = vlaneseq
    %v41 = vshrl.u32 %v40, 7
    %v42 = vsub.s32 0, %v41
    %v43 = vrot.slane %v34, %v42
    %v46 = vunpack.c.l.b16 %v38
    %v47 = vunpack.c.l.b16 %v39
    %v48 = vpack.c.b16 %v47, %v46
    %vm50 = vcmask 130048
    %v52 = vsel %vm50, %v37, 0
    %54 = vmatprep.subr.bf16.mxu0 0
    %55 = vmatpush1.bf16.msra.mxu0 %v48
    %56 = vmatprep.subr.bf16.mxu0 0
    %57 = vmatpush1.bf16.msra.mxu0 0
    %58 = vmatprep.subr.bf16.mxu0 0
    %59 = vmatpush1.bf16.msra.mxu0 0
    %60 = vmatprep.subr.bf16.mxu0 0
    %61 = vmatpush1.bf16.msra.mxu0 0
    %62 = vmatprep.subr.bf16.mxu0 0
    %63 = vmatpush1.bf16.msra.mxu0 0
    %64 = vmatprep.subr.bf16.mxu0 0
    %65 = vmatpush1.bf16.msra.mxu0 0
    %66 = vmatprep.subr.bf16.mxu0 0
    %67 = vmatpush1.bf16.msra.mxu0 0
    %68 = vmatprep.subr.bf16.mxu0 0
    %69 = vmatpush1.bf16.msra.mxu0 0
    %70 = vmatprep.subr.bf16.mxu0 0
    %71 = vmatpush1.bf16.msra.mxu0 0
    %72 = vmatprep.subr.bf16.mxu0 0
    %73 = vmatpush1.bf16.msra.mxu0 0
    %74 = vmatprep.subr.bf16.mxu0 0
    %75 = vmatpush1.bf16.msra.mxu0 0
    %76 = vmatprep.subr.bf16.mxu0 0
    %77 = vmatpush1.bf16.msra.mxu0 0
    %78 = vmatprep.subr.bf16.mxu0 0
    %79 = vmatpush1.bf16.msra.mxu0 0
    %80 = vmatprep.subr.bf16.mxu0 0
    %81 = vmatpush1.bf16.msra.mxu0 0
    %82 = vmatprep.subr.bf16.mxu0 0
    %83 = vmatpush1.bf16.msra.mxu0 0
    %84 = vmatprep.subr.bf16.mxu0 0
    %85 = vmatpush1.bf16.msra.mxu0 0
    %86 = vmatprep.mubr.bf16.mxu0 0
    %87 = vmatmul.mubr.bf16.gmra.mrb[0].mxu0 %v52
    %v88 = vpop.f32.mrb[0].mxu0
    %v89 = vadd.f32 %v43, %v88
    %v90 = vpop.f32.mrb[0].mxu0
    %v91 = vpop.f32.mrb[0].mxu0
    %v92 = vadd.f32 %v43, %v91
    %v93 = vpop.f32.mrb[0].mxu0
    %94 = vdwg.mxu0
    %vm95 = vcmask 261120
    %v96 = vsel %vm95, %v89, 0.0
    %97 = vadd.xlane.f32.xlu0 %v96
    %v98 = vpop.xlane.xlu0 %97
    %v99 = vsel %vm95, %v92, 0.0
    %100 = vadd.xlane.f32.xlu0 %v99
    %v101 = vpop.xlane.xlu0 %100
    %v102 = vrcp.pop 32.0
    %v103 = vmul.f32 %v98, %v102
    %v104 = vmul.f32 %v101, %v102
    %v105 = vsub.f32 %v89, %v103
    %v106 = vsub.f32 %v92, %v104
    %v107 = vmul.f32 %v105, %v105
    %v108 = vmul.f32 %v106, %v106
    %v109 = vsel %vm95, %v107, 0.0
    %110 = vadd.xlane.f32.xlu0 %v109
    %v111 = vpop.xlane.xlu0 %110
    %v112 = vsel %vm95, %v108, 0.0
    %113 = vadd.xlane.f32.xlu0 %v112
    %v114 = vpop.xlane.xlu0 %113
    %v115 = vmul.f32 %v111, %v102
    %v116 = vmul.f32 %v114, %v102
    %v117 = vadd.f32 %v115, 1e-05
    %v118 = vadd.f32 %v116, 1e-05
    %v119 = vrsqrt.pop %v117
    %v120 = vrsqrt.pop %v118
    %v121 = vmul.f32 %v105, %v119
    %v122 = vmul.f32 %v106, %v120
    %v123 = vlaneseq
    %v124 = vshrl.u32 %v123, 7
    %v125 = vsub.s32 1, %v124
    %v126 = vrot.slane %v34, %v125
    %v127 = vmul.f32 %v121, %v126
    %v128 = vmul.f32 %v122, %v126
    %v129 = vlaneseq
    %v130 = vshrl.u32 %v129, 7
    %v131 = vsub.s32 2, %v130
    %v132 = vrot.slane %v34, %v131
    %v133 = vadd.f32 %v127, %v132
    %v134 = vadd.f32 %v128, %v132
    %v135 = vpack.c.bf16 %v134, %v133
    %v136 = vld [vmem:[%s2] sm:$0xff]
    %v137 = vld [vmem:[%s2 + $0x8] sm:$0xff]
    %v138 = vld [vmem:[%s2 + $0x10] sm:$0xff]
    %v139 = vld [vmem:[%s2 + $0x18] sm:$0xff]
    %v140 = vld [vmem:[%s2 + $0x20] sm:$0xff]
    %v141 = vld [vmem:[%s2 + $0x28] sm:$0xff]
    %v142 = vld [vmem:[%s2 + $0x30] sm:$0xff]
    %v143 = vld [vmem:[%s2 + $0x38] sm:$0xff]
    %v144 = vld [vmem:[%s2 + $0x40] sm:$0xff]
    %v145 = vld [vmem:[%s2 + $0x48] sm:$0xff]
    %v146 = vld [vmem:[%s2 + $0x50] sm:$0xff]
    %v147 = vld [vmem:[%s2 + $0x58] sm:$0xff]
    %v148 = vld [vmem:[%s2 + $0x60] sm:$0xff]
    %v149 = vld [vmem:[%s2 + $0x68] sm:$0xff]
    %v150 = vld [vmem:[%s2 + $0x70] sm:$0xff]
    %v151 = vld [vmem:[%s2 + $0x78] sm:$0xff]
    %v152 = vld [vmem:[%s2 + $0x80] sm:$0xff]
    %v153 = vld [vmem:[%s2 + $0x88] sm:$0xff]
    %v154 = vld [vmem:[%s2 + $0x90] sm:$0xff]
    %v155 = vld [vmem:[%s2 + $0x98] sm:$0xff]
    %v156 = vld [vmem:[%s2 + $0xa0] sm:$0xff]
    %v157 = vld [vmem:[%s2 + $0xa8] sm:$0xff]
    %v158 = vld [vmem:[%s2 + $0xb0] sm:$0xff]
    %v159 = vld [vmem:[%s2 + $0xb8] sm:$0xff]
    %v160 = vld [vmem:[%s2 + $0xc0] sm:$0xff]
    %v161 = vld [vmem:[%s2 + $0xc8] sm:$0xff]
    %v162 = vld [vmem:[%s2 + $0xd0] sm:$0xff]
    %v163 = vld [vmem:[%s2 + $0xd8] sm:$0xff]
    %v164 = vld [vmem:[%s2 + $0xe0] sm:$0xff]
    %v165 = vld [vmem:[%s2 + $0xe8] sm:$0xff]
    %v166 = vld [vmem:[%s2 + $0xf0] sm:$0xff]
    %v167 = vld [vmem:[%s2 + $0xf8] sm:$0xff]
    %v200 = vunpack.c.l.b16 %v136
    %v201 = vunpack.c.h.b16 %v136
    %v202 = vunpack.c.l.b16 %v137
    %v203 = vunpack.c.h.b16 %v137
    %v204 = vunpack.c.l.b16 %v138
    %v205 = vunpack.c.h.b16 %v138
    %v206 = vunpack.c.l.b16 %v139
    %v207 = vunpack.c.h.b16 %v139
    %v208 = vunpack.c.l.b16 %v140
    %v209 = vunpack.c.h.b16 %v140
    %v210 = vunpack.c.l.b16 %v141
    %v211 = vunpack.c.h.b16 %v141
    %v212 = vunpack.c.l.b16 %v142
    %v213 = vunpack.c.h.b16 %v142
    %v214 = vunpack.c.l.b16 %v143
    %v215 = vunpack.c.h.b16 %v143
    %v216 = vunpack.c.l.b16 %v144
    %v217 = vunpack.c.h.b16 %v144
    %v218 = vunpack.c.l.b16 %v145
    %v219 = vunpack.c.h.b16 %v145
    %v220 = vunpack.c.l.b16 %v146
    %v221 = vunpack.c.h.b16 %v146
    %v222 = vunpack.c.l.b16 %v147
    %v223 = vunpack.c.h.b16 %v147
    %v224 = vunpack.c.l.b16 %v148
    %v225 = vunpack.c.h.b16 %v148
    %v226 = vunpack.c.l.b16 %v149
    %v227 = vunpack.c.h.b16 %v149
    %v228 = vunpack.c.l.b16 %v150
    %v229 = vunpack.c.h.b16 %v150
    %v230 = vunpack.c.l.b16 %v151
    %v231 = vunpack.c.h.b16 %v151
    %v232 = vunpack.c.l.b16 %v152
    %v233 = vunpack.c.h.b16 %v152
    %v234 = vunpack.c.l.b16 %v153
    %v235 = vunpack.c.h.b16 %v153
    %v236 = vunpack.c.l.b16 %v154
    %v237 = vunpack.c.h.b16 %v154
    %v238 = vunpack.c.l.b16 %v155
    %v239 = vunpack.c.h.b16 %v155
    %v240 = vunpack.c.l.b16 %v156
    %v241 = vunpack.c.h.b16 %v156
    %v242 = vunpack.c.l.b16 %v157
    %v243 = vunpack.c.h.b16 %v157
    %v244 = vunpack.c.l.b16 %v158
    %v245 = vunpack.c.h.b16 %v158
    %v246 = vunpack.c.l.b16 %v159
    %v247 = vunpack.c.h.b16 %v159
    %v248 = vunpack.c.l.b16 %v160
    %v249 = vunpack.c.h.b16 %v160
    %v250 = vunpack.c.l.b16 %v161
    %v251 = vunpack.c.h.b16 %v161
    %v252 = vunpack.c.l.b16 %v162
    %v253 = vunpack.c.h.b16 %v162
    %v254 = vunpack.c.l.b16 %v163
    %v255 = vunpack.c.h.b16 %v163
    %v256 = vunpack.c.l.b16 %v164
    %v257 = vunpack.c.h.b16 %v164
    %v258 = vunpack.c.l.b16 %v165
    %v259 = vunpack.c.h.b16 %v165
    %v260 = vunpack.c.l.b16 %v166
    %v261 = vunpack.c.h.b16 %v166
    %v262 = vunpack.c.l.b16 %v167
    %v263 = vunpack.c.h.b16 %v167
    %v264 = vpack.c.b16 %v216, %v200
    %v265 = vpack.c.b16 %v217, %v201
    %v266 = vpack.c.b16 %v218, %v202
    %v267 = vpack.c.b16 %v219, %v203
    %v268 = vpack.c.b16 %v220, %v204
    %v269 = vpack.c.b16 %v221, %v205
    %v270 = vpack.c.b16 %v222, %v206
    %v271 = vpack.c.b16 %v223, %v207
    %v272 = vpack.c.b16 %v224, %v208
    %v273 = vpack.c.b16 %v225, %v209
    %v274 = vpack.c.b16 %v226, %v210
    %v275 = vpack.c.b16 %v227, %v211
    %v276 = vpack.c.b16 %v228, %v212
    %v277 = vpack.c.b16 %v229, %v213
    %v278 = vpack.c.b16 %v230, %v214
    %v279 = vpack.c.b16 %v231, %v215
    %v280 = vpack.c.b16 %v248, %v232
    %v281 = vpack.c.b16 %v249, %v233
    %v282 = vpack.c.b16 %v250, %v234
    %v283 = vpack.c.b16 %v251, %v235
    %v284 = vpack.c.b16 %v252, %v236
    %v285 = vpack.c.b16 %v253, %v237
    %v286 = vpack.c.b16 %v254, %v238
    %v287 = vpack.c.b16 %v255, %v239
    %v288 = vpack.c.b16 %v256, %v240
    %v289 = vpack.c.b16 %v257, %v241
    %v290 = vpack.c.b16 %v258, %v242
    %v291 = vpack.c.b16 %v259, %v243
    %v292 = vpack.c.b16 %v260, %v244
    %v293 = vpack.c.b16 %v261, %v245
    %v294 = vpack.c.b16 %v262, %v246
    %v295 = vpack.c.b16 %v263, %v247
    %v329 = vsel %vm95, %v135, 0
    %331 = vmatprep.subr.bf16.mxu0 %v265
    %332 = vmatpush1.bf16.msra.mxu0 %v264
    %333 = vmatprep.subr.bf16.mxu0 %v281
    %334 = vmatpush1.bf16.msra.mxu0 %v280
    %335 = vmatprep.subr.bf16.mxu0 0
    %336 = vmatpush1.bf16.msra.mxu0 0
    %337 = vmatprep.subr.bf16.mxu0 0
    %338 = vmatpush1.bf16.msra.mxu0 0
    %339 = vmatprep.subr.bf16.mxu0 0
    %340 = vmatpush1.bf16.msra.mxu0 0
    %341 = vmatprep.subr.bf16.mxu0 0
    %342 = vmatpush1.bf16.msra.mxu0 0
    %343 = vmatprep.subr.bf16.mxu0 0
    %344 = vmatpush1.bf16.msra.mxu0 0
    %345 = vmatprep.subr.bf16.mxu0 0
    %346 = vmatpush1.bf16.msra.mxu0 0
    %347 = vmatprep.subr.bf16.mxu0 0
    %348 = vmatpush1.bf16.msra.mxu0 0
    %349 = vmatprep.subr.bf16.mxu0 0
    %350 = vmatpush1.bf16.msra.mxu0 0
    %351 = vmatprep.subr.bf16.mxu0 0
    %352 = vmatpush1.bf16.msra.mxu0 0
    %353 = vmatprep.subr.bf16.mxu0 0
    %354 = vmatpush1.bf16.msra.mxu0 0
    %355 = vmatprep.subr.bf16.mxu0 0
    %356 = vmatpush1.bf16.msra.mxu0 0
    %357 = vmatprep.subr.bf16.mxu0 0
    %358 = vmatpush1.bf16.msra.mxu0 0
    %359 = vmatprep.subr.bf16.mxu0 0
    %360 = vmatpush1.bf16.msra.mxu0 0
    %361 = vmatprep.subr.bf16.mxu0 0
    %362 = vmatpush1.bf16.msra.mxu0 0
    %363 = vmatprep.mubr.bf16.mxu0 0
    %364 = vmatmul.mubr.bf16.gmra.mrb[0].mxu0 %v329
    %v365 = vpop.f32.mrb[0].mxu0
    %v366 = vadd.f32 0.0, %v365
    %v367 = vpop.f32.mrb[0].mxu0
    %v368 = vadd.f32 0.0, %v367
    %v369 = vpop.f32.mrb[0].mxu0
    %v370 = vadd.f32 0.0, %v369
    %v371 = vpop.f32.mrb[0].mxu0
    %v372 = vadd.f32 0.0, %v371
    %373 = vdwg.mxu0
    %374 = vmatprep.subr.bf16.mxu0 %v267
    %375 = vmatpush1.bf16.msra.mxu0 %v266
    %376 = vmatprep.subr.bf16.mxu0 %v283
    %377 = vmatpush1.bf16.msra.mxu0 %v282
    %378 = vmatprep.subr.bf16.mxu0 0
    %379 = vmatpush1.bf16.msra.mxu0 0
    %380 = vmatprep.subr.bf16.mxu0 0
    %381 = vmatpush1.bf16.msra.mxu0 0
    %382 = vmatprep.subr.bf16.mxu0 0
    %383 = vmatpush1.bf16.msra.mxu0 0
    %384 = vmatprep.subr.bf16.mxu0 0
    %385 = vmatpush1.bf16.msra.mxu0 0
    %386 = vmatprep.subr.bf16.mxu0 0
    %387 = vmatpush1.bf16.msra.mxu0 0
    %388 = vmatprep.subr.bf16.mxu0 0
    %389 = vmatpush1.bf16.msra.mxu0 0
    %390 = vmatprep.subr.bf16.mxu0 0
    %391 = vmatpush1.bf16.msra.mxu0 0
    %392 = vmatprep.subr.bf16.mxu0 0
    %393 = vmatpush1.bf16.msra.mxu0 0
    %394 = vmatprep.subr.bf16.mxu0 0
    %395 = vmatpush1.bf16.msra.mxu0 0
    %396 = vmatprep.subr.bf16.mxu0 0
    %397 = vmatpush1.bf16.msra.mxu0 0
    %398 = vmatprep.subr.bf16.mxu0 0
    %399 = vmatpush1.bf16.msra.mxu0 0
    %400 = vmatprep.subr.bf16.mxu0 0
    %401 = vmatpush1.bf16.msra.mxu0 0
    %402 = vmatprep.subr.bf16.mxu0 0
    %403 = vmatpush1.bf16.msra.mxu0 0
    %404 = vmatprep.subr.bf16.mxu0 0
    %405 = vmatpush1.bf16.msra.mxu0 0
    %406 = vmatprep.mubr.bf16.mxu0 0
    %407 = vmatmul.mubr.bf16.gmra.mrb[0].mxu0 %v329
    %v408 = vpop.f32.mrb[0].mxu0
    %v409 = vadd.f32 0.0, %v408
    %v410 = vpop.f32.mrb[0].mxu0
    %v411 = vadd.f32 0.0, %v410
    %v412 = vpop.f32.mrb[0].mxu0
    %v413 = vadd.f32 0.0, %v412
    %v414 = vpop.f32.mrb[0].mxu0
    %v415 = vadd.f32 0.0, %v414
    %416 = vdwg.mxu0
    %417 = vmatprep.subr.bf16.mxu0 %v269
    %418 = vmatpush1.bf16.msra.mxu0 %v268
    %419 = vmatprep.subr.bf16.mxu0 %v285
    %420 = vmatpush1.bf16.msra.mxu0 %v284
    %421 = vmatprep.subr.bf16.mxu0 0
    %422 = vmatpush1.bf16.msra.mxu0 0
    %423 = vmatprep.subr.bf16.mxu0 0
    %424 = vmatpush1.bf16.msra.mxu0 0
    %425 = vmatprep.subr.bf16.mxu0 0
    %426 = vmatpush1.bf16.msra.mxu0 0
    %427 = vmatprep.subr.bf16.mxu0 0
    %428 = vmatpush1.bf16.msra.mxu0 0
    %429 = vmatprep.subr.bf16.mxu0 0
    %430 = vmatpush1.bf16.msra.mxu0 0
    %431 = vmatprep.subr.bf16.mxu0 0
    %432 = vmatpush1.bf16.msra.mxu0 0
    %433 = vmatprep.subr.bf16.mxu0 0
    %434 = vmatpush1.bf16.msra.mxu0 0
    %435 = vmatprep.subr.bf16.mxu0 0
    %436 = vmatpush1.bf16.msra.mxu0 0
    %437 = vmatprep.subr.bf16.mxu0 0
    %438 = vmatpush1.bf16.msra.mxu0 0
    %439 = vmatprep.subr.bf16.mxu0 0
    %440 = vmatpush1.bf16.msra.mxu0 0
    %441 = vmatprep.subr.bf16.mxu0 0
    %442 = vmatpush1.bf16.msra.mxu0 0
    %443 = vmatprep.subr.bf16.mxu0 0
    %444 = vmatpush1.bf16.msra.mxu0 0
    %445 = vmatprep.subr.bf16.mxu0 0
    %446 = vmatpush1.bf16.msra.mxu0 0
    %447 = vmatprep.subr.bf16.mxu0 0
    %448 = vmatpush1.bf16.msra.mxu0 0
    %449 = vmatprep.mubr.bf16.mxu0 0
    %450 = vmatmul.mubr.bf16.gmra.mrb[0].mxu0 %v329
    %v451 = vpop.f32.mrb[0].mxu0
    %v452 = vadd.f32 0.0, %v451
    %v453 = vpop.f32.mrb[0].mxu0
    %v454 = vadd.f32 0.0, %v453
    %v455 = vpop.f32.mrb[0].mxu0
    %v456 = vadd.f32 0.0, %v455
    %v457 = vpop.f32.mrb[0].mxu0
    %v458 = vadd.f32 0.0, %v457
    %459 = vdwg.mxu0
    %460 = vmatprep.subr.bf16.mxu0 %v271
    %461 = vmatpush1.bf16.msra.mxu0 %v270
    %462 = vmatprep.subr.bf16.mxu0 %v287
    %463 = vmatpush1.bf16.msra.mxu0 %v286
    %464 = vmatprep.subr.bf16.mxu0 0
    %465 = vmatpush1.bf16.msra.mxu0 0
    %466 = vmatprep.subr.bf16.mxu0 0
    %467 = vmatpush1.bf16.msra.mxu0 0
    %468 = vmatprep.subr.bf16.mxu0 0
    %469 = vmatpush1.bf16.msra.mxu0 0
    %470 = vmatprep.subr.bf16.mxu0 0
    %471 = vmatpush1.bf16.msra.mxu0 0
    %472 = vmatprep.subr.bf16.mxu0 0
    %473 = vmatpush1.bf16.msra.mxu0 0
    %474 = vmatprep.subr.bf16.mxu0 0
    %475 = vmatpush1.bf16.msra.mxu0 0
    %476 = vmatprep.subr.bf16.mxu0 0
    %477 = vmatpush1.bf16.msra.mxu0 0
    %478 = vmatprep.subr.bf16.mxu0 0
    %479 = vmatpush1.bf16.msra.mxu0 0
    %480 = vmatprep.subr.bf16.mxu0 0
    %481 = vmatpush1.bf16.msra.mxu0 0
    %482 = vmatprep.subr.bf16.mxu0 0
    %483 = vmatpush1.bf16.msra.mxu0 0
    %484 = vmatprep.subr.bf16.mxu0 0
    %485 = vmatpush1.bf16.msra.mxu0 0
    %486 = vmatprep.subr.bf16.mxu0 0
    %487 = vmatpush1.bf16.msra.mxu0 0
    %488 = vmatprep.subr.bf16.mxu0 0
    %489 = vmatpush1.bf16.msra.mxu0 0
    %490 = vmatprep.subr.bf16.mxu0 0
    %491 = vmatpush1.bf16.msra.mxu0 0
    %492 = vmatprep.mubr.bf16.mxu0 0
    %493 = vmatmul.mubr.bf16.gmra.mrb[0].mxu0 %v329
    %v494 = vpop.f32.mrb[0].mxu0
    %v495 = vadd.f32 0.0, %v494
    %v496 = vpop.f32.mrb[0].mxu0
    %v497 = vadd.f32 0.0, %v496
    %v498 = vpop.f32.mrb[0].mxu0
    %v499 = vadd.f32 0.0, %v498
    %v500 = vpop.f32.mrb[0].mxu0
    %v501 = vadd.f32 0.0, %v500
    %502 = vdwg.mxu0
    %503 = vmatprep.subr.bf16.mxu0 %v273
    %504 = vmatpush1.bf16.msra.mxu0 %v272
    %505 = vmatprep.subr.bf16.mxu0 %v289
    %506 = vmatpush1.bf16.msra.mxu0 %v288
    %507 = vmatprep.subr.bf16.mxu0 0
    %508 = vmatpush1.bf16.msra.mxu0 0
    %509 = vmatprep.subr.bf16.mxu0 0
    %510 = vmatpush1.bf16.msra.mxu0 0
    %511 = vmatprep.subr.bf16.mxu0 0
    %512 = vmatpush1.bf16.msra.mxu0 0
    %513 = vmatprep.subr.bf16.mxu0 0
    %514 = vmatpush1.bf16.msra.mxu0 0
    %515 = vmatprep.subr.bf16.mxu0 0
    %516 = vmatpush1.bf16.msra.mxu0 0
    %517 = vmatprep.subr.bf16.mxu0 0
    %518 = vmatpush1.bf16.msra.mxu0 0
    %519 = vmatprep.subr.bf16.mxu0 0
    %520 = vmatpush1.bf16.msra.mxu0 0
    %521 = vmatprep.subr.bf16.mxu0 0
    %522 = vmatpush1.bf16.msra.mxu0 0
    %523 = vmatprep.subr.bf16.mxu0 0
    %524 = vmatpush1.bf16.msra.mxu0 0
    %525 = vmatprep.subr.bf16.mxu0 0
    %526 = vmatpush1.bf16.msra.mxu0 0
    %527 = vmatprep.subr.bf16.mxu0 0
    %528 = vmatpush1.bf16.msra.mxu0 0
    %529 = vmatprep.subr.bf16.mxu0 0
    %530 = vmatpush1.bf16.msra.mxu0 0
    %531 = vmatprep.subr.bf16.mxu0 0
    %532 = vmatpush1.bf16.msra.mxu0 0
    %533 = vmatprep.subr.bf16.mxu0 0
    %534 = vmatpush1.bf16.msra.mxu0 0
    %535 = vmatprep.mubr.bf16.mxu0 0
    %536 = vmatmul.mubr.bf16.gmra.mrb[0].mxu0 %v329
    %v537 = vpop.f32.mrb[0].mxu0
    %v538 = vadd.f32 0.0, %v537
    %v539 = vpop.f32.mrb[0].mxu0
    %v540 = vadd.f32 0.0, %v539
    %v541 = vpop.f32.mrb[0].mxu0
    %v542 = vadd.f32 0.0, %v541
    %v543 = vpop.f32.mrb[0].mxu0
    %v544 = vadd.f32 0.0, %v543
    %545 = vdwg.mxu0
    %546 = vmatprep.subr.bf16.mxu0 %v275
    %547 = vmatpush1.bf16.msra.mxu0 %v274
    %548 = vmatprep.subr.bf16.mxu0 %v291
    %549 = vmatpush1.bf16.msra.mxu0 %v290
    %550 = vmatprep.subr.bf16.mxu0 0
    %551 = vmatpush1.bf16.msra.mxu0 0
    %552 = vmatprep.subr.bf16.mxu0 0
    %553 = vmatpush1.bf16.msra.mxu0 0
    %554 = vmatprep.subr.bf16.mxu0 0
    %555 = vmatpush1.bf16.msra.mxu0 0
    %556 = vmatprep.subr.bf16.mxu0 0
    %557 = vmatpush1.bf16.msra.mxu0 0
    %558 = vmatprep.subr.bf16.mxu0 0
    %559 = vmatpush1.bf16.msra.mxu0 0
    %560 = vmatprep.subr.bf16.mxu0 0
    %561 = vmatpush1.bf16.msra.mxu0 0
    %562 = vmatprep.subr.bf16.mxu0 0
    %563 = vmatpush1.bf16.msra.mxu0 0
    %564 = vmatprep.subr.bf16.mxu0 0
    %565 = vmatpush1.bf16.msra.mxu0 0
    %566 = vmatprep.subr.bf16.mxu0 0
    %567 = vmatpush1.bf16.msra.mxu0 0
    %568 = vmatprep.subr.bf16.mxu0 0
    %569 = vmatpush1.bf16.msra.mxu0 0
    %570 = vmatprep.subr.bf16.mxu0 0
    %571 = vmatpush1.bf16.msra.mxu0 0
    %572 = vmatprep.subr.bf16.mxu0 0
    %573 = vmatpush1.bf16.msra.mxu0 0
    %574 = vmatprep.subr.bf16.mxu0 0
    %575 = vmatpush1.bf16.msra.mxu0 0
    %576 = vmatprep.subr.bf16.mxu0 0
    %577 = vmatpush1.bf16.msra.mxu0 0
    %578 = vmatprep.mubr.bf16.mxu0 0
    %579 = vmatmul.mubr.bf16.gmra.mrb[0].mxu0 %v329
    %v580 = vpop.f32.mrb[0].mxu0
    %v581 = vadd.f32 0.0, %v580
    %v582 = vpop.f32.mrb[0].mxu0
    %v583 = vadd.f32 0.0, %v582
    %v584 = vpop.f32.mrb[0].mxu0
    %v585 = vadd.f32 0.0, %v584
    %v586 = vpop.f32.mrb[0].mxu0
    %v587 = vadd.f32 0.0, %v586
    %588 = vdwg.mxu0
    %589 = vmatprep.subr.bf16.mxu0 %v277
    %590 = vmatpush1.bf16.msra.mxu0 %v276
    %591 = vmatprep.subr.bf16.mxu0 %v293
    %592 = vmatpush1.bf16.msra.mxu0 %v292
    %593 = vmatprep.subr.bf16.mxu0 0
    %594 = vmatpush1.bf16.msra.mxu0 0
    %595 = vmatprep.subr.bf16.mxu0 0
    %596 = vmatpush1.bf16.msra.mxu0 0
    %597 = vmatprep.subr.bf16.mxu0 0
    %598 = vmatpush1.bf16.msra.mxu0 0
    %599 = vmatprep.subr.bf16.mxu0 0
    %600 = vmatpush1.bf16.msra.mxu0 0
    %601 = vmatprep.subr.bf16.mxu0 0
    %602 = vmatpush1.bf16.msra.mxu0 0
    %603 = vmatprep.subr.bf16.mxu0 0
    %604 = vmatpush1.bf16.msra.mxu0 0
    %605 = vmatprep.subr.bf16.mxu0 0
    %606 = vmatpush1.bf16.msra.mxu0 0
    %607 = vmatprep.subr.bf16.mxu0 0
    %608 = vmatpush1.bf16.msra.mxu0 0
    %609 = vmatprep.subr.bf16.mxu0 0
    %610 = vmatpush1.bf16.msra.mxu0 0
    %611 = vmatprep.subr.bf16.mxu0 0
    %612 = vmatpush1.bf16.msra.mxu0 0
    %613 = vmatprep.subr.bf16.mxu0 0
    %614 = vmatpush1.bf16.msra.mxu0 0
    %615 = vmatprep.subr.bf16.mxu0 0
    %616 = vmatpush1.bf16.msra.mxu0 0
    %617 = vmatprep.subr.bf16.mxu0 0
    %618 = vmatpush1.bf16.msra.mxu0 0
    %619 = vmatprep.subr.bf16.mxu0 0
    %620 = vmatpush1.bf16.msra.mxu0 0
    %621 = vmatprep.mubr.bf16.mxu0 0
    %622 = vmatmul.mubr.bf16.gmra.mrb[0].mxu0 %v329
    %v623 = vpop.f32.mrb[0].mxu0
    %v624 = vadd.f32 0.0, %v623
    %v625 = vpop.f32.mrb[0].mxu0
    %v626 = vadd.f32 0.0, %v625
    %v627 = vpop.f32.mrb[0].mxu0
    %v628 = vadd.f32 0.0, %v627
    %v629 = vpop.f32.mrb[0].mxu0
    %v630 = vadd.f32 0.0, %v629
    %631 = vdwg.mxu0
    %632 = vmatprep.subr.bf16.mxu0 %v279
    %633 = vmatpush1.bf16.msra.mxu0 %v278
    %634 = vmatprep.subr.bf16.mxu0 %v295
    %635 = vmatpush1.bf16.msra.mxu0 %v294
    %636 = vmatprep.subr.bf16.mxu0 0
    %637 = vmatpush1.bf16.msra.mxu0 0
    %638 = vmatprep.subr.bf16.mxu0 0
    %639 = vmatpush1.bf16.msra.mxu0 0
    %640 = vmatprep.subr.bf16.mxu0 0
    %641 = vmatpush1.bf16.msra.mxu0 0
    %642 = vmatprep.subr.bf16.mxu0 0
    %643 = vmatpush1.bf16.msra.mxu0 0
    %644 = vmatprep.subr.bf16.mxu0 0
    %645 = vmatpush1.bf16.msra.mxu0 0
    %646 = vmatprep.subr.bf16.mxu0 0
    %647 = vmatpush1.bf16.msra.mxu0 0
    %648 = vmatprep.subr.bf16.mxu0 0
    %649 = vmatpush1.bf16.msra.mxu0 0
    %650 = vmatprep.subr.bf16.mxu0 0
    %651 = vmatpush1.bf16.msra.mxu0 0
    %652 = vmatprep.subr.bf16.mxu0 0
    %653 = vmatpush1.bf16.msra.mxu0 0
    %654 = vmatprep.subr.bf16.mxu0 0
    %655 = vmatpush1.bf16.msra.mxu0 0
    %656 = vmatprep.subr.bf16.mxu0 0
    %657 = vmatpush1.bf16.msra.mxu0 0
    %658 = vmatprep.subr.bf16.mxu0 0
    %659 = vmatpush1.bf16.msra.mxu0 0
    %660 = vmatprep.subr.bf16.mxu0 0
    %661 = vmatpush1.bf16.msra.mxu0 0
    %662 = vmatprep.subr.bf16.mxu0 0
    %663 = vmatpush1.bf16.msra.mxu0 0
    %664 = vmatprep.mubr.bf16.mxu0 0
    %665 = vmatmul.mubr.bf16.gmra.mrb[0].mxu0 %v329
    %v666 = vpop.f32.mrb[0].mxu0
    %v667 = vadd.f32 0.0, %v666
    %v668 = vpop.f32.mrb[0].mxu0
    %v669 = vadd.f32 0.0, %v668
    %v670 = vpop.f32.mrb[0].mxu0
    %v671 = vadd.f32 0.0, %v670
    %v672 = vpop.f32.mrb[0].mxu0
    %v673 = vadd.f32 0.0, %v672
    %674 = vdwg.mxu0
    %v675 = vpack.c.bf16 %v370, %v366
    %v676 = vpack.c.bf16 %v372, %v368
    %v677 = vpack.c.bf16 %v413, %v409
    %v678 = vpack.c.bf16 %v415, %v411
    %v679 = vpack.c.bf16 %v456, %v452
    %v680 = vpack.c.bf16 %v458, %v454
    %v681 = vpack.c.bf16 %v499, %v495
    %v682 = vpack.c.bf16 %v501, %v497
    %v683 = vpack.c.bf16 %v542, %v538
    %v684 = vpack.c.bf16 %v544, %v540
    %v685 = vpack.c.bf16 %v585, %v581
    %v686 = vpack.c.bf16 %v587, %v583
    %v687 = vpack.c.bf16 %v628, %v624
    %v688 = vpack.c.bf16 %v630, %v626
    %v689 = vpack.c.bf16 %v671, %v667
    %v690 = vpack.c.bf16 %v673, %v669
    %v691 = vld [vmem:[%s3] sm:$0xff]
    %v692 = vld [vmem:[%s3 + $0x8] sm:$0xff]
    %v695 = vcombine.high %v691, %v691
    %v697 = vunpack.c.l.s4 1966171168
    %v698 = vunpack.c.0.s8 %v697
    %v699 = vlaneseq
    %v700 = vshrl.u32 %v699, 7
    %v701 = vsub.s32 %v698, %v700
    %v702 = vrot.slane %v691, %v701
    %v704 = vunpack.c.l.s4 1966171168
    %v705 = vunpack.c.0.s8 %v704
    %v706 = vlaneseq
    %v707 = vshrl.u32 %v706, 7
    %v708 = vsub.s32 %v705, %v707
    %v709 = vrot.slane %v695, %v708
    %v710 = vcombine.high %v702, %v702
    %v711 = vcombine.high %v709, %v709
    %v713 = vunpack.c.l.s4 1966171168
    %v714 = vunpack.c.0.s8 %v713
    %v715 = vlaneseq
    %v716 = vshrl.u32 %v715, 7
    %v717 = vsub.s32 %v714, %v716
    %v718 = vrot.slane %v702, %v717
    %v720 = vunpack.c.l.s4 1966171168
    %v721 = vunpack.c.0.s8 %v720
    %v722 = vlaneseq
    %v723 = vshrl.u32 %v722, 7
    %v724 = vsub.s32 %v721, %v723
    %v725 = vrot.slane %v709, %v724
    %v727 = vunpack.c.l.s4 1966171168
    %v728 = vunpack.c.0.s8 %v727
    %v729 = vlaneseq
    %v730 = vshrl.u32 %v729, 7
    %v731 = vsub.s32 %v728, %v730
    %v732 = vrot.slane %v710, %v731
    %v734 = vunpack.c.l.s4 1966171168
    %v735 = vunpack.c.0.s8 %v734
    %v736 = vlaneseq
    %v737 = vshrl.u32 %v736, 7
    %v738 = vsub.s32 %v735, %v737
    %v739 = vrot.slane %v711, %v738
    %v740 = vcombine.high %v718, %v718
    %v741 = vcombine.high %v725, %v725
    %v742 = vcombine.high %v732, %v732
    %v743 = vcombine.high %v739, %v739
    %v744 = vcombine.high %v692, %v692
    %v746 = vunpack.c.l.s4 1966171168
    %v747 = vunpack.c.0.s8 %v746
    %v748 = vlaneseq
    %v749 = vshrl.u32 %v748, 7
    %v750 = vsub.s32 %v747, %v749
    %v751 = vrot.slane %v692, %v750
    %v753 = vunpack.c.l.s4 1966171168
    %v754 = vunpack.c.0.s8 %v753
    %v755 = vlaneseq
    %v756 = vshrl.u32 %v755, 7
    %v757 = vsub.s32 %v754, %v756
    %v758 = vrot.slane %v744, %v757
    %v759 = vcombine.high %v751, %v751
    %v760 = vcombine.high %v758, %v758
    %v762 = vunpack.c.l.s4 1966171168
    %v763 = vunpack.c.0.s8 %v762
    %v764 = vlaneseq
    %v765 = vshrl.u32 %v764, 7
    %v766 = vsub.s32 %v763, %v765
    %v767 = vrot.slane %v751, %v766
    %v769 = vunpack.c.l.s4 1966171168
    %v770 = vunpack.c.0.s8 %v769
    %v771 = vlaneseq
    %v772 = vshrl.u32 %v771, 7
    %v773 = vsub.s32 %v770, %v772
    %v774 = vrot.slane %v758, %v773
    %v776 = vunpack.c.l.s4 1966171168
    %v777 = vunpack.c.0.s8 %v776
    %v778 = vlaneseq
    %v779 = vshrl.u32 %v778, 7
    %v780 = vsub.s32 %v777, %v779
    %v781 = vrot.slane %v759, %v780
    %v783 = vunpack.c.l.s4 1966171168
    %v784 = vunpack.c.0.s8 %v783
    %v785 = vlaneseq
    %v786 = vshrl.u32 %v785, 7
    %v787 = vsub.s32 %v784, %v786
    %v788 = vrot.slane %v760, %v787
    %v789 = vcombine.high %v767, %v767
    %v790 = vcombine.high %v774, %v774
    %v791 = vcombine.high %v781, %v781
    %v792 = vcombine.high %v788, %v788
    %v794 = vpack.i.b16 %v718, %v718
    %v796 = vlaneseq
    %v797 = vshrl.u32 %v796, 7
    %v798 = vsub.s32 0, %v797
    %v799 = vrot.slane %v794, %v798
    %v801 = vpack.i.b16 %v732, %v732
    %v803 = vlaneseq
    %v804 = vshrl.u32 %v803, 7
    %v805 = vsub.s32 0, %v804
    %v806 = vrot.slane %v801, %v805
    %v808 = vpack.i.b16 %v740, %v740
    %v810 = vlaneseq
    %v811 = vshrl.u32 %v810, 7
    %v812 = vsub.s32 0, %v811
    %v813 = vrot.slane %v808, %v812
    %v815 = vpack.i.b16 %v742, %v742
    %v817 = vlaneseq
    %v818 = vshrl.u32 %v817, 7
    %v819 = vsub.s32 0, %v818
    %v820 = vrot.slane %v815, %v819
    %v822 = vpack.i.b16 %v725, %v725
    %v824 = vlaneseq
    %v825 = vshrl.u32 %v824, 7
    %v826 = vsub.s32 0, %v825
    %v827 = vrot.slane %v822, %v826
    %v829 = vpack.i.b16 %v739, %v739
    %v831 = vlaneseq
    %v832 = vshrl.u32 %v831, 7
    %v833 = vsub.s32 0, %v832
    %v834 = vrot.slane %v829, %v833
    %v836 = vpack.i.b16 %v741, %v741
    %v838 = vlaneseq
    %v839 = vshrl.u32 %v838, 7
    %v840 = vsub.s32 0, %v839
    %v841 = vrot.slane %v836, %v840
    %v843 = vpack.i.b16 %v743, %v743
    %v845 = vlaneseq
    %v846 = vshrl.u32 %v845, 7
    %v847 = vsub.s32 0, %v846
    %v848 = vrot.slane %v843, %v847
    %v850 = vpack.i.b16 %v767, %v767
    %v852 = vlaneseq
    %v853 = vshrl.u32 %v852, 7
    %v854 = vsub.s32 0, %v853
    %v855 = vrot.slane %v850, %v854
    %v857 = vpack.i.b16 %v781, %v781
    %v859 = vlaneseq
    %v860 = vshrl.u32 %v859, 7
    %v861 = vsub.s32 0, %v860
    %v862 = vrot.slane %v857, %v861
    %v864 = vpack.i.b16 %v789, %v789
    %v866 = vlaneseq
    %v867 = vshrl.u32 %v866, 7
    %v868 = vsub.s32 0, %v867
    %v869 = vrot.slane %v864, %v868
    %v871 = vpack.i.b16 %v791, %v791
    %v873 = vlaneseq
    %v874 = vshrl.u32 %v873, 7
    %v875 = vsub.s32 0, %v874
    %v876 = vrot.slane %v871, %v875
    %v878 = vpack.i.b16 %v774, %v774
    %v880 = vlaneseq
    %v881 = vshrl.u32 %v880, 7
    %v882 = vsub.s32 0, %v881
    %v883 = vrot.slane %v878, %v882
    %v885 = vpack.i.b16 %v788, %v788
    %v887 = vlaneseq
    %v888 = vshrl.u32 %v887, 7
    %v889 = vsub.s32 0, %v888
    %v890 = vrot.slane %v885, %v889
    %v892 = vpack.i.b16 %v790, %v790
    %v894 = vlaneseq
    %v895 = vshrl.u32 %v894, 7
    %v896 = vsub.s32 0, %v895
    %v897 = vrot.slane %v892, %v896
    %v899 = vpack.i.b16 %v792, %v792
    %v901 = vlaneseq
    %v902 = vshrl.u32 %v901, 7
    %v903 = vsub.s32 0, %v902
    %v904 = vrot.slane %v899, %v903
    %v905 = vadd.bf16 %v675, %v799
    %v906 = vadd.bf16 %v676, %v806
    %v907 = vadd.bf16 %v677, %v813
    %v908 = vadd.bf16 %v678, %v820
    %v909 = vadd.bf16 %v679, %v827
    %v910 = vadd.bf16 %v680, %v834
    %v911 = vadd.bf16 %v681, %v841
    %v912 = vadd.bf16 %v682, %v848
    %v913 = vadd.bf16 %v683, %v855
    %v914 = vadd.bf16 %v684, %v862
    %v915 = vadd.bf16 %v685, %v869
    %v916 = vadd.bf16 %v686, %v876
    %v917 = vadd.bf16 %v687, %v883
    %v918 = vadd.bf16 %v688, %v890
    %v919 = vadd.bf16 %v689, %v897
    %v920 = vadd.bf16 %v690, %v904
    %v921 = vmax.bf16 %v905, 0
    %v922 = vmax.bf16 %v906, 0
    %v923 = vmax.bf16 %v907, 0
    %v924 = vmax.bf16 %v908, 0
    %v925 = vmax.bf16 %v909, 0
    %v926 = vmax.bf16 %v910, 0
    %v927 = vmax.bf16 %v911, 0
    %v928 = vmax.bf16 %v912, 0
    %v929 = vmax.bf16 %v913, 0
    %v930 = vmax.bf16 %v914, 0
    %v931 = vmax.bf16 %v915, 0
    %v932 = vmax.bf16 %v916, 0
    %v933 = vmax.bf16 %v917, 0
    %v934 = vmax.bf16 %v918, 0
    %v935 = vmax.bf16 %v919, 0
    %v936 = vmax.bf16 %v920, 0
    %v937 = vld [vmem:[%s4] sm:$0xf]
    %v938 = vld [vmem:[%s4 + $0x4] sm:$0xf]
    %v939 = vld [vmem:[%s4 + $0x8] sm:$0xf]
    %v940 = vld [vmem:[%s4 + $0xc] sm:$0xf]
    %v941 = vld [vmem:[%s4 + $0x10] sm:$0xf]
    %v942 = vld [vmem:[%s4 + $0x14] sm:$0xf]
    %v943 = vld [vmem:[%s4 + $0x18] sm:$0xf]
    %v944 = vld [vmem:[%s4 + $0x1c] sm:$0xf]
    %v945 = vld [vmem:[%s4 + $0x20] sm:$0xf]
    %v946 = vld [vmem:[%s4 + $0x24] sm:$0xf]
    %v947 = vld [vmem:[%s4 + $0x28] sm:$0xf]
    %v948 = vld [vmem:[%s4 + $0x2c] sm:$0xf]
    %v949 = vld [vmem:[%s4 + $0x30] sm:$0xf]
    %v950 = vld [vmem:[%s4 + $0x34] sm:$0xf]
    %v951 = vld [vmem:[%s4 + $0x38] sm:$0xf]
    %v952 = vld [vmem:[%s4 + $0x3c] sm:$0xf]
    %v953 = vld [vmem:[%s4 + $0x40] sm:$0xf]
    %v954 = vld [vmem:[%s4 + $0x44] sm:$0xf]
    %v955 = vld [vmem:[%s4 + $0x48] sm:$0xf]
    %v956 = vld [vmem:[%s4 + $0x4c] sm:$0xf]
    %v957 = vld [vmem:[%s4 + $0x50] sm:$0xf]
    %v958 = vld [vmem:[%s4 + $0x54] sm:$0xf]
    %v959 = vld [vmem:[%s4 + $0x58] sm:$0xf]
    %v960 = vld [vmem:[%s4 + $0x5c] sm:$0xf]
    %v961 = vld [vmem:[%s4 + $0x60] sm:$0xf]
    %v962 = vld [vmem:[%s4 + $0x64] sm:$0xf]
    %v963 = vld [vmem:[%s4 + $0x68] sm:$0xf]
    %v964 = vld [vmem:[%s4 + $0x6c] sm:$0xf]
    %v965 = vld [vmem:[%s4 + $0x70] sm:$0xf]
    %v966 = vld [vmem:[%s4 + $0x74] sm:$0xf]
    %v967 = vld [vmem:[%s4 + $0x78] sm:$0xf]
    %v968 = vld [vmem:[%s4 + $0x7c] sm:$0xf]
    %v969 = vld [vmem:[%s4 + $0x80] sm:$0xf]
    %v970 = vld [vmem:[%s4 + $0x84] sm:$0xf]
    %v971 = vld [vmem:[%s4 + $0x88] sm:$0xf]
    %v972 = vld [vmem:[%s4 + $0x8c] sm:$0xf]
    %v973 = vld [vmem:[%s4 + $0x90] sm:$0xf]
    %v974 = vld [vmem:[%s4 + $0x94] sm:$0xf]
    %v975 = vld [vmem:[%s4 + $0x98] sm:$0xf]
    %v976 = vld [vmem:[%s4 + $0x9c] sm:$0xf]
    %v977 = vld [vmem:[%s4 + $0xa0] sm:$0xf]
    %v978 = vld [vmem:[%s4 + $0xa4] sm:$0xf]
    %v979 = vld [vmem:[%s4 + $0xa8] sm:$0xf]
    %v980 = vld [vmem:[%s4 + $0xac] sm:$0xf]
    %v981 = vld [vmem:[%s4 + $0xb0] sm:$0xf]
    %v982 = vld [vmem:[%s4 + $0xb4] sm:$0xf]
    %v983 = vld [vmem:[%s4 + $0xb8] sm:$0xf]
    %v984 = vld [vmem:[%s4 + $0xbc] sm:$0xf]
    %v985 = vld [vmem:[%s4 + $0xc0] sm:$0xf]
    %v986 = vld [vmem:[%s4 + $0xc4] sm:$0xf]
    %v987 = vld [vmem:[%s4 + $0xc8] sm:$0xf]
    %v988 = vld [vmem:[%s4 + $0xcc] sm:$0xf]
    %v989 = vld [vmem:[%s4 + $0xd0] sm:$0xf]
    %v990 = vld [vmem:[%s4 + $0xd4] sm:$0xf]
    %v991 = vld [vmem:[%s4 + $0xd8] sm:$0xf]
    %v992 = vld [vmem:[%s4 + $0xdc] sm:$0xf]
    %v993 = vld [vmem:[%s4 + $0xe0] sm:$0xf]
    %v994 = vld [vmem:[%s4 + $0xe4] sm:$0xf]
    %v995 = vld [vmem:[%s4 + $0xe8] sm:$0xf]
    %v996 = vld [vmem:[%s4 + $0xec] sm:$0xf]
    %v997 = vld [vmem:[%s4 + $0xf0] sm:$0xf]
    %v998 = vld [vmem:[%s4 + $0xf4] sm:$0xf]
    %v999 = vld [vmem:[%s4 + $0xf8] sm:$0xf]
    %v1000 = vld [vmem:[%s4 + $0xfc] sm:$0xf]
    %v1001 = vld [vmem:[%s4 + $0x100] sm:$0xf]
    %v1002 = vld [vmem:[%s4 + $0x104] sm:$0xf]
    %v1003 = vld [vmem:[%s4 + $0x108] sm:$0xf]
    %v1004 = vld [vmem:[%s4 + $0x10c] sm:$0xf]
    %v1005 = vld [vmem:[%s4 + $0x110] sm:$0xf]
    %v1006 = vld [vmem:[%s4 + $0x114] sm:$0xf]
    %v1007 = vld [vmem:[%s4 + $0x118] sm:$0xf]
    %v1008 = vld [vmem:[%s4 + $0x11c] sm:$0xf]
    %v1009 = vld [vmem:[%s4 + $0x120] sm:$0xf]
    %v1010 = vld [vmem:[%s4 + $0x124] sm:$0xf]
    %v1011 = vld [vmem:[%s4 + $0x128] sm:$0xf]
    %v1012 = vld [vmem:[%s4 + $0x12c] sm:$0xf]
    %v1013 = vld [vmem:[%s4 + $0x130] sm:$0xf]
    %v1014 = vld [vmem:[%s4 + $0x134] sm:$0xf]
    %v1015 = vld [vmem:[%s4 + $0x138] sm:$0xf]
    %v1016 = vld [vmem:[%s4 + $0x13c] sm:$0xf]
    %v1017 = vld [vmem:[%s4 + $0x140] sm:$0xf]
    %v1018 = vld [vmem:[%s4 + $0x144] sm:$0xf]
    %v1019 = vld [vmem:[%s4 + $0x148] sm:$0xf]
    %v1020 = vld [vmem:[%s4 + $0x14c] sm:$0xf]
    %v1021 = vld [vmem:[%s4 + $0x150] sm:$0xf]
    %v1022 = vld [vmem:[%s4 + $0x154] sm:$0xf]
    %v1023 = vld [vmem:[%s4 + $0x158] sm:$0xf]
    %v1024 = vld [vmem:[%s4 + $0x15c] sm:$0xf]
    %v1025 = vld [vmem:[%s4 + $0x160] sm:$0xf]
    %v1026 = vld [vmem:[%s4 + $0x164] sm:$0xf]
    %v1027 = vld [vmem:[%s4 + $0x168] sm:$0xf]
    %v1028 = vld [vmem:[%s4 + $0x16c] sm:$0xf]
    %v1029 = vld [vmem:[%s4 + $0x170] sm:$0xf]
    %v1030 = vld [vmem:[%s4 + $0x174] sm:$0xf]
    %v1031 = vld [vmem:[%s4 + $0x178] sm:$0xf]
    %v1032 = vld [vmem:[%s4 + $0x17c] sm:$0xf]
    %v1033 = vld [vmem:[%s4 + $0x180] sm:$0xf]
    %v1034 = vld [vmem:[%s4 + $0x184] sm:$0xf]
    %v1035 = vld [vmem:[%s4 + $0x188] sm:$0xf]
    %v1036 = vld [vmem:[%s4 + $0x18c] sm:$0xf]
    %v1037 = vld [vmem:[%s4 + $0x190] sm:$0xf]
    %v1038 = vld [vmem:[%s4 + $0x194] sm:$0xf]
    %v1039 = vld [vmem:[%s4 + $0x198] sm:$0xf]
    %v1040 = vld [vmem:[%s4 + $0x19c] sm:$0xf]
    %v1041 = vld [vmem:[%s4 + $0x1a0] sm:$0xf]
    %v1042 = vld [vmem:[%s4 + $0x1a4] sm:$0xf]
    %v1043 = vld [vmem:[%s4 + $0x1a8] sm:$0xf]
    %v1044 = vld [vmem:[%s4 + $0x1ac] sm:$0xf]
    %v1045 = vld [vmem:[%s4 + $0x1b0] sm:$0xf]
    %v1046 = vld [vmem:[%s4 + $0x1b4] sm:$0xf]
    %v1047 = vld [vmem:[%s4 + $0x1b8] sm:$0xf]
    %v1048 = vld [vmem:[%s4 + $0x1bc] sm:$0xf]
    %v1049 = vld [vmem:[%s4 + $0x1c0] sm:$0xf]
    %v1050 = vld [vmem:[%s4 + $0x1c4] sm:$0xf]
    %v1051 = vld [vmem:[%s4 + $0x1c8] sm:$0xf]
    %v1052 = vld [vmem:[%s4 + $0x1cc] sm:$0xf]
    %v1053 = vld [vmem:[%s4 + $0x1d0] sm:$0xf]
    %v1054 = vld [vmem:[%s4 + $0x1d4] sm:$0xf]
    %v1055 = vld [vmem:[%s4 + $0x1d8] sm:$0xf]
    %v1056 = vld [vmem:[%s4 + $0x1dc] sm:$0xf]
    %v1057 = vld [vmem:[%s4 + $0x1e0] sm:$0xf]
    %v1058 = vld [vmem:[%s4 + $0x1e4] sm:$0xf]
    %v1059 = vld [vmem:[%s4 + $0x1e8] sm:$0xf]
    %v1060 = vld [vmem:[%s4 + $0x1ec] sm:$0xf]
    %v1061 = vld [vmem:[%s4 + $0x1f0] sm:$0xf]
    %v1062 = vld [vmem:[%s4 + $0x1f4] sm:$0xf]
    %v1063 = vld [vmem:[%s4 + $0x1f8] sm:$0xf]
    %v1064 = vld [vmem:[%s4 + $0x1fc] sm:$0xf]
    %v1065 = vld [vmem:[%s4 + $0x200] sm:$0xf]
    %v1066 = vld [vmem:[%s4 + $0x204] sm:$0xf]
    %v1067 = vld [vmem:[%s4 + $0x208] sm:$0xf]
    %v1068 = vld [vmem:[%s4 + $0x20c] sm:$0xf]
    %v1069 = vld [vmem:[%s4 + $0x210] sm:$0xf]
    %v1070 = vld [vmem:[%s4 + $0x214] sm:$0xf]
    %v1071 = vld [vmem:[%s4 + $0x218] sm:$0xf]
    %v1072 = vld [vmem:[%s4 + $0x21c] sm:$0xf]
    %v1073 = vld [vmem:[%s4 + $0x220] sm:$0xf]
    %v1074 = vld [vmem:[%s4 + $0x224] sm:$0xf]
    %v1075 = vld [vmem:[%s4 + $0x228] sm:$0xf]
    %v1076 = vld [vmem:[%s4 + $0x22c] sm:$0xf]
    %v1077 = vld [vmem:[%s4 + $0x230] sm:$0xf]
    %v1078 = vld [vmem:[%s4 + $0x234] sm:$0xf]
    %v1079 = vld [vmem:[%s4 + $0x238] sm:$0xf]
    %v1080 = vld [vmem:[%s4 + $0x23c] sm:$0xf]
    %v1081 = vld [vmem:[%s4 + $0x240] sm:$0xf]
    %v1082 = vld [vmem:[%s4 + $0x244] sm:$0xf]
    %v1083 = vld [vmem:[%s4 + $0x248] sm:$0xf]
    %v1084 = vld [vmem:[%s4 + $0x24c] sm:$0xf]
    %v1085 = vld [vmem:[%s4 + $0x250] sm:$0xf]
    %v1086 = vld [vmem:[%s4 + $0x254] sm:$0xf]
    %v1087 = vld [vmem:[%s4 + $0x258] sm:$0xf]
    %v1088 = vld [vmem:[%s4 + $0x25c] sm:$0xf]
    %v1089 = vld [vmem:[%s4 + $0x260] sm:$0xf]
    %v1090 = vld [vmem:[%s4 + $0x264] sm:$0xf]
    %v1091 = vld [vmem:[%s4 + $0x268] sm:$0xf]
    %v1092 = vld [vmem:[%s4 + $0x26c] sm:$0xf]
    %v1093 = vld [vmem:[%s4 + $0x270] sm:$0xf]
    %v1094 = vld [vmem:[%s4 + $0x274] sm:$0xf]
    %v1095 = vld [vmem:[%s4 + $0x278] sm:$0xf]
    %v1096 = vld [vmem:[%s4 + $0x27c] sm:$0xf]
    %v1097 = vld [vmem:[%s4 + $0x280] sm:$0xf]
    %v1098 = vld [vmem:[%s4 + $0x284] sm:$0xf]
    %v1099 = vld [vmem:[%s4 + $0x288] sm:$0xf]
    %v1100 = vld [vmem:[%s4 + $0x28c] sm:$0xf]
    %v1101 = vld [vmem:[%s4 + $0x290] sm:$0xf]
    %v1102 = vld [vmem:[%s4 + $0x294] sm:$0xf]
    %v1103 = vld [vmem:[%s4 + $0x298] sm:$0xf]
    %v1104 = vld [vmem:[%s4 + $0x29c] sm:$0xf]
    %v1105 = vld [vmem:[%s4 + $0x2a0] sm:$0xf]
    %v1106 = vld [vmem:[%s4 + $0x2a4] sm:$0xf]
    %v1107 = vld [vmem:[%s4 + $0x2a8] sm:$0xf]
    %v1108 = vld [vmem:[%s4 + $0x2ac] sm:$0xf]
    %v1109 = vld [vmem:[%s4 + $0x2b0] sm:$0xf]
    %v1110 = vld [vmem:[%s4 + $0x2b4] sm:$0xf]
    %v1111 = vld [vmem:[%s4 + $0x2b8] sm:$0xf]
    %v1112 = vld [vmem:[%s4 + $0x2bc] sm:$0xf]
    %v1113 = vld [vmem:[%s4 + $0x2c0] sm:$0xf]
    %v1114 = vld [vmem:[%s4 + $0x2c4] sm:$0xf]
    %v1115 = vld [vmem:[%s4 + $0x2c8] sm:$0xf]
    %v1116 = vld [vmem:[%s4 + $0x2cc] sm:$0xf]
    %v1117 = vld [vmem:[%s4 + $0x2d0] sm:$0xf]
    %v1118 = vld [vmem:[%s4 + $0x2d4] sm:$0xf]
    %v1119 = vld [vmem:[%s4 + $0x2d8] sm:$0xf]
    %v1120 = vld [vmem:[%s4 + $0x2dc] sm:$0xf]
    %v1121 = vld [vmem:[%s4 + $0x2e0] sm:$0xf]
    %v1122 = vld [vmem:[%s4 + $0x2e4] sm:$0xf]
    %v1123 = vld [vmem:[%s4 + $0x2e8] sm:$0xf]
    %v1124 = vld [vmem:[%s4 + $0x2ec] sm:$0xf]
    %v1125 = vld [vmem:[%s4 + $0x2f0] sm:$0xf]
    %v1126 = vld [vmem:[%s4 + $0x2f4] sm:$0xf]
    %v1127 = vld [vmem:[%s4 + $0x2f8] sm:$0xf]
    %v1128 = vld [vmem:[%s4 + $0x2fc] sm:$0xf]
    %v1129 = vld [vmem:[%s4 + $0x300] sm:$0xf]
    %v1130 = vld [vmem:[%s4 + $0x304] sm:$0xf]
    %v1131 = vld [vmem:[%s4 + $0x308] sm:$0xf]
    %v1132 = vld [vmem:[%s4 + $0x30c] sm:$0xf]
    %v1133 = vld [vmem:[%s4 + $0x310] sm:$0xf]
    %v1134 = vld [vmem:[%s4 + $0x314] sm:$0xf]
    %v1135 = vld [vmem:[%s4 + $0x318] sm:$0xf]
    %v1136 = vld [vmem:[%s4 + $0x31c] sm:$0xf]
    %v1137 = vld [vmem:[%s4 + $0x320] sm:$0xf]
    %v1138 = vld [vmem:[%s4 + $0x324] sm:$0xf]
    %v1139 = vld [vmem:[%s4 + $0x328] sm:$0xf]
    %v1140 = vld [vmem:[%s4 + $0x32c] sm:$0xf]
    %v1141 = vld [vmem:[%s4 + $0x330] sm:$0xf]
    %v1142 = vld [vmem:[%s4 + $0x334] sm:$0xf]
    %v1143 = vld [vmem:[%s4 + $0x338] sm:$0xf]
    %v1144 = vld [vmem:[%s4 + $0x33c] sm:$0xf]
    %v1145 = vld [vmem:[%s4 + $0x340] sm:$0xf]
    %v1146 = vld [vmem:[%s4 + $0x344] sm:$0xf]
    %v1147 = vld [vmem:[%s4 + $0x348] sm:$0xf]
    %v1148 = vld [vmem:[%s4 + $0x34c] sm:$0xf]
    %v1149 = vld [vmem:[%s4 + $0x350] sm:$0xf]
    %v1150 = vld [vmem:[%s4 + $0x354] sm:$0xf]
    %v1151 = vld [vmem:[%s4 + $0x358] sm:$0xf]
    %v1152 = vld [vmem:[%s4 + $0x35c] sm:$0xf]
    %v1153 = vld [vmem:[%s4 + $0x360] sm:$0xf]
    %v1154 = vld [vmem:[%s4 + $0x364] sm:$0xf]
    %v1155 = vld [vmem:[%s4 + $0x368] sm:$0xf]
    %v1156 = vld [vmem:[%s4 + $0x36c] sm:$0xf]
    %v1157 = vld [vmem:[%s4 + $0x370] sm:$0xf]
    %v1158 = vld [vmem:[%s4 + $0x374] sm:$0xf]
    %v1159 = vld [vmem:[%s4 + $0x378] sm:$0xf]
    %v1160 = vld [vmem:[%s4 + $0x37c] sm:$0xf]
    %v1161 = vld [vmem:[%s4 + $0x380] sm:$0xf]
    %v1162 = vld [vmem:[%s4 + $0x384] sm:$0xf]
    %v1163 = vld [vmem:[%s4 + $0x388] sm:$0xf]
    %v1164 = vld [vmem:[%s4 + $0x38c] sm:$0xf]
    %v1165 = vld [vmem:[%s4 + $0x390] sm:$0xf]
    %v1166 = vld [vmem:[%s4 + $0x394] sm:$0xf]
    %v1167 = vld [vmem:[%s4 + $0x398] sm:$0xf]
    %v1168 = vld [vmem:[%s4 + $0x39c] sm:$0xf]
    %v1169 = vld [vmem:[%s4 + $0x3a0] sm:$0xf]
    %v1170 = vld [vmem:[%s4 + $0x3a4] sm:$0xf]
    %v1171 = vld [vmem:[%s4 + $0x3a8] sm:$0xf]
    %v1172 = vld [vmem:[%s4 + $0x3ac] sm:$0xf]
    %v1173 = vld [vmem:[%s4 + $0x3b0] sm:$0xf]
    %v1174 = vld [vmem:[%s4 + $0x3b4] sm:$0xf]
    %v1175 = vld [vmem:[%s4 + $0x3b8] sm:$0xf]
    %v1176 = vld [vmem:[%s4 + $0x3bc] sm:$0xf]
    %v1177 = vld [vmem:[%s4 + $0x3c0] sm:$0xf]
    %v1178 = vld [vmem:[%s4 + $0x3c4] sm:$0xf]
    %v1179 = vld [vmem:[%s4 + $0x3c8] sm:$0xf]
    %v1180 = vld [vmem:[%s4 + $0x3cc] sm:$0xf]
    %v1181 = vld [vmem:[%s4 + $0x3d0] sm:$0xf]
    %v1182 = vld [vmem:[%s4 + $0x3d4] sm:$0xf]
    %v1183 = vld [vmem:[%s4 + $0x3d8] sm:$0xf]
    %v1184 = vld [vmem:[%s4 + $0x3dc] sm:$0xf]
    %v1185 = vld [vmem:[%s4 + $0x3e0] sm:$0xf]
    %v1186 = vld [vmem:[%s4 + $0x3e4] sm:$0xf]
    %v1187 = vld [vmem:[%s4 + $0x3e8] sm:$0xf]
    %v1188 = vld [vmem:[%s4 + $0x3ec] sm:$0xf]
    %v1189 = vld [vmem:[%s4 + $0x3f0] sm:$0xf]
    %v1190 = vld [vmem:[%s4 + $0x3f4] sm:$0xf]
    %v1191 = vld [vmem:[%s4 + $0x3f8] sm:$0xf]
    %v1192 = vld [vmem:[%s4 + $0x3fc] sm:$0xf]
    %v1193 = vlaneseq
    %v1194 = vshrl.u32 %v1193, 7
    %v1195 = vsub.s32 3, %v1194
    %v1196 = vrot.slane %v34, %v1195
    %v1453 = vunpack.c.l.b16 %v937
    %v1454 = vunpack.c.l.b16 %v938
    %v1455 = vunpack.c.l.b16 %v939
    %v1456 = vunpack.c.l.b16 %v940
    %v1457 = vunpack.c.l.b16 %v941
    %v1458 = vunpack.c.l.b16 %v942
    %v1459 = vunpack.c.l.b16 %v943
    %v1460 = vunpack.c.l.b16 %v944
    %v1461 = vunpack.c.l.b16 %v945
    %v1462 = vunpack.c.l.b16 %v946
    %v1463 = vunpack.c.l.b16 %v947
    %v1464 = vunpack.c.l.b16 %v948
    %v1465 = vunpack.c.l.b16 %v949
    %v1466 = vunpack.c.l.b16 %v950
    %v1467 = vunpack.c.l.b16 %v951
    %v1468 = vunpack.c.l.b16 %v952
    %v1469 = vunpack.c.l.b16 %v953
    %v1470 = vunpack.c.l.b16 %v954
    %v1471 = vunpack.c.l.b16 %v955
    %v1472 = vunpack.c.l.b16 %v956
    %v1473 = vunpack.c.l.b16 %v957
    %v1474 = vunpack.c.l.b16 %v958
    %v1475 = vunpack.c.l.b16 %v959
    %v1476 = vunpack.c.l.b16 %v960
    %v1477 = vunpack.c.l.b16 %v961
    %v1478 = vunpack.c.l.b16 %v962
    %v1479 = vunpack.c.l.b16 %v963
    %v1480 = vunpack.c.l.b16 %v964
    %v1481 = vunpack.c.l.b16 %v965
    %v1482 = vunpack.c.l.b16 %v966
    %v1483 = vunpack.c.l.b16 %v967
    %v1484 = vunpack.c.l.b16 %v968
    %v1485 = vunpack.c.l.b16 %v969
    %v1486 = vunpack.c.l.b16 %v970
    %v1487 = vunpack.c.l.b16 %v971
    %v1488 = vunpack.c.l.b16 %v972
    %v1489 = vunpack.c.l.b16 %v973
    %v1490 = vunpack.c.l.b16 %v974
    %v1491 = vunpack.c.l.b16 %v975
    %v1492 = vunpack.c.l.b16 %v976
    %v1493 = vunpack.c.l.b16 %v977
    %v1494 = vunpack.c.l.b16 %v978
    %v1495 = vunpack.c.l.b16 %v979
    %v1496 = vunpack.c.l.b16 %v980
    %v1497 = vunpack.c.l.b16 %v981
    %v1498 = vunpack.c.l.b16 %v982
    %v1499 = vunpack.c.l.b16 %v983
    %v1500 = vunpack.c.l.b16 %v984
    %v1501 = vunpack.c.l.b16 %v985
    %v1502 = vunpack.c.l.b16 %v986
    %v1503 = vunpack.c.l.b16 %v987
    %v1504 = vunpack.c.l.b16 %v988
    %v1505 = vunpack.c.l.b16 %v989
    %v1506 = vunpack.c.l.b16 %v990
    %v1507 = vunpack.c.l.b16 %v991
    %v1508 = vunpack.c.l.b16 %v992
    %v1509 = vunpack.c.l.b16 %v993
    %v1510 = vunpack.c.l.b16 %v994
    %v1511 = vunpack.c.l.b16 %v995
    %v1512 = vunpack.c.l.b16 %v996
    %v1513 = vunpack.c.l.b16 %v997
    %v1514 = vunpack.c.l.b16 %v998
    %v1515 = vunpack.c.l.b16 %v999
    %v1516 = vunpack.c.l.b16 %v1000
    %v1517 = vunpack.c.l.b16 %v1001
    %v1518 = vunpack.c.l.b16 %v1002
    %v1519 = vunpack.c.l.b16 %v1003
    %v1520 = vunpack.c.l.b16 %v1004
    %v1521 = vunpack.c.l.b16 %v1005
    %v1522 = vunpack.c.l.b16 %v1006
    %v1523 = vunpack.c.l.b16 %v1007
    %v1524 = vunpack.c.l.b16 %v1008
    %v1525 = vunpack.c.l.b16 %v1009
    %v1526 = vunpack.c.l.b16 %v1010
    %v1527 = vunpack.c.l.b16 %v1011
    %v1528 = vunpack.c.l.b16 %v1012
    %v1529 = vunpack.c.l.b16 %v1013
    %v1530 = vunpack.c.l.b16 %v1014
    %v1531 = vunpack.c.l.b16 %v1015
    %v1532 = vunpack.c.l.b16 %v1016
    %v1533 = vunpack.c.l.b16 %v1017
    %v1534 = vunpack.c.l.b16 %v1018
    %v1535 = vunpack.c.l.b16 %v1019
    %v1536 = vunpack.c.l.b16 %v1020
    %v1537 = vunpack.c.l.b16 %v1021
    %v1538 = vunpack.c.l.b16 %v1022
    %v1539 = vunpack.c.l.b16 %v1023
    %v1540 = vunpack.c.l.b16 %v1024
    %v1541 = vunpack.c.l.b16 %v1025
    %v1542 = vunpack.c.l.b16 %v1026
    %v1543 = vunpack.c.l.b16 %v1027
    %v1544 = vunpack.c.l.b16 %v1028
    %v1545 = vunpack.c.l.b16 %v1029
    %v1546 = vunpack.c.l.b16 %v1030
    %v1547 = vunpack.c.l.b16 %v1031
    %v1548 = vunpack.c.l.b16 %v1032
    %v1549 = vunpack.c.l.b16 %v1033
    %v1550 = vunpack.c.l.b16 %v1034
    %v1551 = vunpack.c.l.b16 %v1035
    %v1552 = vunpack.c.l.b16 %v1036
    %v1553 = vunpack.c.l.b16 %v1037
    %v1554 = vunpack.c.l.b16 %v1038
    %v1555 = vunpack.c.l.b16 %v1039
    %v1556 = vunpack.c.l.b16 %v1040
    %v1557 = vunpack.c.l.b16 %v1041
    %v1558 = vunpack.c.l.b16 %v1042
    %v1559 = vunpack.c.l.b16 %v1043
    %v1560 = vunpack.c.l.b16 %v1044
    %v1561 = vunpack.c.l.b16 %v1045
    %v1562 = vunpack.c.l.b16 %v1046
    %v1563 = vunpack.c.l.b16 %v1047
    %v1564 = vunpack.c.l.b16 %v1048
    %v1565 = vunpack.c.l.b16 %v1049
    %v1566 = vunpack.c.l.b16 %v1050
    %v1567 = vunpack.c.l.b16 %v1051
    %v1568 = vunpack.c.l.b16 %v1052
    %v1569 = vunpack.c.l.b16 %v1053
    %v1570 = vunpack.c.l.b16 %v1054
    %v1571 = vunpack.c.l.b16 %v1055
    %v1572 = vunpack.c.l.b16 %v1056
    %v1573 = vunpack.c.l.b16 %v1057
    %v1574 = vunpack.c.l.b16 %v1058
    %v1575 = vunpack.c.l.b16 %v1059
    %v1576 = vunpack.c.l.b16 %v1060
    %v1577 = vunpack.c.l.b16 %v1061
    %v1578 = vunpack.c.l.b16 %v1062
    %v1579 = vunpack.c.l.b16 %v1063
    %v1580 = vunpack.c.l.b16 %v1064
    %v1581 = vunpack.c.l.b16 %v1065
    %v1582 = vunpack.c.l.b16 %v1066
    %v1583 = vunpack.c.l.b16 %v1067
    %v1584 = vunpack.c.l.b16 %v1068
    %v1585 = vunpack.c.l.b16 %v1069
    %v1586 = vunpack.c.l.b16 %v1070
    %v1587 = vunpack.c.l.b16 %v1071
    %v1588 = vunpack.c.l.b16 %v1072
    %v1589 = vunpack.c.l.b16 %v1073
    %v1590 = vunpack.c.l.b16 %v1074
    %v1591 = vunpack.c.l.b16 %v1075
    %v1592 = vunpack.c.l.b16 %v1076
    %v1593 = vunpack.c.l.b16 %v1077
    %v1594 = vunpack.c.l.b16 %v1078
    %v1595 = vunpack.c.l.b16 %v1079
    %v1596 = vunpack.c.l.b16 %v1080
    %v1597 = vunpack.c.l.b16 %v1081
    %v1598 = vunpack.c.l.b16 %v1082
    %v1599 = vunpack.c.l.b16 %v1083
    %v1600 = vunpack.c.l.b16 %v1084
    %v1601 = vunpack.c.l.b16 %v1085
    %v1602 = vunpack.c.l.b16 %v1086
    %v1603 = vunpack.c.l.b16 %v1087
    %v1604 = vunpack.c.l.b16 %v1088
    %v1605 = vunpack.c.l.b16 %v1089
    %v1606 = vunpack.c.l.b16 %v1090
    %v1607 = vunpack.c.l.b16 %v1091
    %v1608 = vunpack.c.l.b16 %v1092
    %v1609 = vunpack.c.l.b16 %v1093
    %v1610 = vunpack.c.l.b16 %v1094
    %v1611 = vunpack.c.l.b16 %v1095
    %v1612 = vunpack.c.l.b16 %v1096
    %v1613 = vunpack.c.l.b16 %v1097
    %v1614 = vunpack.c.l.b16 %v1098
    %v1615 = vunpack.c.l.b16 %v1099
    %v1616 = vunpack.c.l.b16 %v1100
    %v1617 = vunpack.c.l.b16 %v1101
    %v1618 = vunpack.c.l.b16 %v1102
    %v1619 = vunpack.c.l.b16 %v1103
    %v1620 = vunpack.c.l.b16 %v1104
    %v1621 = vunpack.c.l.b16 %v1105
    %v1622 = vunpack.c.l.b16 %v1106
    %v1623 = vunpack.c.l.b16 %v1107
    %v1624 = vunpack.c.l.b16 %v1108
    %v1625 = vunpack.c.l.b16 %v1109
    %v1626 = vunpack.c.l.b16 %v1110
    %v1627 = vunpack.c.l.b16 %v1111
    %v1628 = vunpack.c.l.b16 %v1112
    %v1629 = vunpack.c.l.b16 %v1113
    %v1630 = vunpack.c.l.b16 %v1114
    %v1631 = vunpack.c.l.b16 %v1115
    %v1632 = vunpack.c.l.b16 %v1116
    %v1633 = vunpack.c.l.b16 %v1117
    %v1634 = vunpack.c.l.b16 %v1118
    %v1635 = vunpack.c.l.b16 %v1119
    %v1636 = vunpack.c.l.b16 %v1120
    %v1637 = vunpack.c.l.b16 %v1121
    %v1638 = vunpack.c.l.b16 %v1122
    %v1639 = vunpack.c.l.b16 %v1123
    %v1640 = vunpack.c.l.b16 %v1124
    %v1641 = vunpack.c.l.b16 %v1125
    %v1642 = vunpack.c.l.b16 %v1126
    %v1643 = vunpack.c.l.b16 %v1127
    %v1644 = vunpack.c.l.b16 %v1128
    %v1645 = vunpack.c.l.b16 %v1129
    %v1646 = vunpack.c.l.b16 %v1130
    %v1647 = vunpack.c.l.b16 %v1131
    %v1648 = vunpack.c.l.b16 %v1132
    %v1649 = vunpack.c.l.b16 %v1133
    %v1650 = vunpack.c.l.b16 %v1134
    %v1651 = vunpack.c.l.b16 %v1135
    %v1652 = vunpack.c.l.b16 %v1136
    %v1653 = vunpack.c.l.b16 %v1137
    %v1654 = vunpack.c.l.b16 %v1138
    %v1655 = vunpack.c.l.b16 %v1139
    %v1656 = vunpack.c.l.b16 %v1140
    %v1657 = vunpack.c.l.b16 %v1141
    %v1658 = vunpack.c.l.b16 %v1142
    %v1659 = vunpack.c.l.b16 %v1143
    %v1660 = vunpack.c.l.b16 %v1144
    %v1661 = vunpack.c.l.b16 %v1145
    %v1662 = vunpack.c.l.b16 %v1146
    %v1663 = vunpack.c.l.b16 %v1147
    %v1664 = vunpack.c.l.b16 %v1148
    %v1665 = vunpack.c.l.b16 %v1149
    %v1666 = vunpack.c.l.b16 %v1150
    %v1667 = vunpack.c.l.b16 %v1151
    %v1668 = vunpack.c.l.b16 %v1152
    %v1669 = vunpack.c.l.b16 %v1153
    %v1670 = vunpack.c.l.b16 %v1154
    %v1671 = vunpack.c.l.b16 %v1155
    %v1672 = vunpack.c.l.b16 %v1156
    %v1673 = vunpack.c.l.b16 %v1157
    %v1674 = vunpack.c.l.b16 %v1158
    %v1675 = vunpack.c.l.b16 %v1159
    %v1676 = vunpack.c.l.b16 %v1160
    %v1677 = vunpack.c.l.b16 %v1161
    %v1678 = vunpack.c.l.b16 %v1162
    %v1679 = vunpack.c.l.b16 %v1163
    %v1680 = vunpack.c.l.b16 %v1164
    %v1681 = vunpack.c.l.b16 %v1165
    %v1682 = vunpack.c.l.b16 %v1166
    %v1683 = vunpack.c.l.b16 %v1167
    %v1684 = vunpack.c.l.b16 %v1168
    %v1685 = vunpack.c.l.b16 %v1169
    %v1686 = vunpack.c.l.b16 %v1170
    %v1687 = vunpack.c.l.b16 %v1171
    %v1688 = vunpack.c.l.b16 %v1172
    %v1689 = vunpack.c.l.b16 %v1173
    %v1690 = vunpack.c.l.b16 %v1174
    %v1691 = vunpack.c.l.b16 %v1175
    %v1692 = vunpack.c.l.b16 %v1176
    %v1693 = vunpack.c.l.b16 %v1177
    %v1694 = vunpack.c.l.b16 %v1178
    %v1695 = vunpack.c.l.b16 %v1179
    %v1696 = vunpack.c.l.b16 %v1180
    %v1697 = vunpack.c.l.b16 %v1181
    %v1698 = vunpack.c.l.b16 %v1182
    %v1699 = vunpack.c.l.b16 %v1183
    %v1700 = vunpack.c.l.b16 %v1184
    %v1701 = vunpack.c.l.b16 %v1185
    %v1702 = vunpack.c.l.b16 %v1186
    %v1703 = vunpack.c.l.b16 %v1187
    %v1704 = vunpack.c.l.b16 %v1188
    %v1705 = vunpack.c.l.b16 %v1189
    %v1706 = vunpack.c.l.b16 %v1190
    %v1707 = vunpack.c.l.b16 %v1191
    %v1708 = vunpack.c.l.b16 %v1192
    %v1709 = vpack.c.b16 %v1454, %v1453
    %v1710 = vpack.c.b16 %v1456, %v1455
    %v1711 = vpack.c.b16 %v1458, %v1457
    %v1712 = vpack.c.b16 %v1460, %v1459
    %v1713 = vpack.c.b16 %v1462, %v1461
    %v1714 = vpack.c.b16 %v1464, %v1463
    %v1715 = vpack.c.b16 %v1466, %v1465
    %v1716 = vpack.c.b16 %v1468, %v1467
    %v1717 = vpack.c.b16 %v1470, %v1469
    %v1718 = vpack.c.b16 %v1472, %v1471
    %v1719 = vpack.c.b16 %v1474, %v1473
    %v1720 = vpack.c.b16 %v1476, %v1475
    %v1721 = vpack.c.b16 %v1478, %v1477
    %v1722 = vpack.c.b16 %v1480, %v1479
    %v1723 = vpack.c.b16 %v1482, %v1481
    %v1724 = vpack.c.b16 %v1484, %v1483
    %v1725 = vpack.c.b16 %v1486, %v1485
    %v1726 = vpack.c.b16 %v1488, %v1487
    %v1727 = vpack.c.b16 %v1490, %v1489
    %v1728 = vpack.c.b16 %v1492, %v1491
    %v1729 = vpack.c.b16 %v1494, %v1493
    %v1730 = vpack.c.b16 %v1496, %v1495
    %v1731 = vpack.c.b16 %v1498, %v1497
    %v1732 = vpack.c.b16 %v1500, %v1499
    %v1733 = vpack.c.b16 %v1502, %v1501
    %v1734 = vpack.c.b16 %v1504, %v1503
    %v1735 = vpack.c.b16 %v1506, %v1505
    %v1736 = vpack.c.b16 %v1508, %v1507
    %v1737 = vpack.c.b16 %v1510, %v1509
    %v1738 = vpack.c.b16 %v1512, %v1511
    %v1739 = vpack.c.b16 %v1514, %v1513
    %v1740 = vpack.c.b16 %v1516, %v1515
    %v1741 = vpack.c.b16 %v1518, %v1517
    %v1742 = vpack.c.b16 %v1520, %v1519
    %v1743 = vpack.c.b16 %v1522, %v1521
    %v1744 = vpack.c.b16 %v1524, %v1523
    %v1745 = vpack.c.b16 %v1526, %v1525
    %v1746 = vpack.c.b16 %v1528, %v1527
    %v1747 = vpack.c.b16 %v1530, %v1529
    %v1748 = vpack.c.b16 %v1532, %v1531
    %v1749 = vpack.c.b16 %v1534, %v1533
    %v1750 = vpack.c.b16 %v1536, %v1535
    %v1751 = vpack.c.b16 %v1538, %v1537
    %v1752 = vpack.c.b16 %v1540, %v1539
    %v1753 = vpack.c.b16 %v1542, %v1541
    %v1754 = vpack.c.b16 %v1544, %v1543
    %v1755 = vpack.c.b16 %v1546, %v1545
    %v1756 = vpack.c.b16 %v1548, %v1547
    %v1757 = vpack.c.b16 %v1550, %v1549
    %v1758 = vpack.c.b16 %v1552, %v1551
    %v1759 = vpack.c.b16 %v1554, %v1553
    %v1760 = vpack.c.b16 %v1556, %v1555
    %v1761 = vpack.c.b16 %v1558, %v1557
    %v1762 = vpack.c.b16 %v1560, %v1559
    %v1763 = vpack.c.b16 %v1562, %v1561
    %v1764 = vpack.c.b16 %v1564, %v1563
    %v1765 = vpack.c.b16 %v1566, %v1565
    %v1766 = vpack.c.b16 %v1568, %v1567
    %v1767 = vpack.c.b16 %v1570, %v1569
    %v1768 = vpack.c.b16 %v1572, %v1571
    %v1769 = vpack.c.b16 %v1574, %v1573
    %v1770 = vpack.c.b16 %v1576, %v1575
    %v1771 = vpack.c.b16 %v1578, %v1577
    %v1772 = vpack.c.b16 %v1580, %v1579
    %v1773 = vpack.c.b16 %v1582, %v1581
    %v1774 = vpack.c.b16 %v1584, %v1583
    %v1775 = vpack.c.b16 %v1586, %v1585
    %v1776 = vpack.c.b16 %v1588, %v1587
    %v1777 = vpack.c.b16 %v1590, %v1589
    %v1778 = vpack.c.b16 %v1592, %v1591
    %v1779 = vpack.c.b16 %v1594, %v1593
    %v1780 = vpack.c.b16 %v1596, %v1595
    %v1781 = vpack.c.b16 %v1598, %v1597
    %v1782 = vpack.c.b16 %v1600, %v1599
    %v1783 = vpack.c.b16 %v1602, %v1601
    %v1784 = vpack.c.b16 %v1604, %v1603
    %v1785 = vpack.c.b16 %v1606, %v1605
    %v1786 = vpack.c.b16 %v1608, %v1607
    %v1787 = vpack.c.b16 %v1610, %v1609
    %v1788 = vpack.c.b16 %v1612, %v1611
    %v1789 = vpack.c.b16 %v1614, %v1613
    %v1790 = vpack.c.b16 %v1616, %v1615
    %v1791 = vpack.c.b16 %v1618, %v1617
    %v1792 = vpack.c.b16 %v1620, %v1619
    %v1793 = vpack.c.b16 %v1622, %v1621
    %v1794 = vpack.c.b16 %v1624, %v1623
    %v1795 = vpack.c.b16 %v1626, %v1625
    %v1796 = vpack.c.b16 %v1628, %v1627
    %v1797 = vpack.c.b16 %v1630, %v1629
    %v1798 = vpack.c.b16 %v1632, %v1631
    %v1799 = vpack.c.b16 %v1634, %v1633
    %v1800 = vpack.c.b16 %v1636, %v1635
    %v1801 = vpack.c.b16 %v1638, %v1637
    %v1802 = vpack.c.b16 %v1640, %v1639
    %v1803 = vpack.c.b16 %v1642, %v1641
    %v1804 = vpack.c.b16 %v1644, %v1643
    %v1805 = vpack.c.b16 %v1646, %v1645
    %v1806 = vpack.c.b16 %v1648, %v1647
    %v1807 = vpack.c.b16 %v1650, %v1649
    %v1808 = vpack.c.b16 %v1652, %v1651
    %v1809 = vpack.c.b16 %v1654, %v1653
    %v1810 = vpack.c.b16 %v1656, %v1655
    %v1811 = vpack.c.b16 %v1658, %v1657
    %v1812 = vpack.c.b16 %v1660, %v1659
    %v1813 = vpack.c.b16 %v1662, %v1661
    %v1814 = vpack.c.b16 %v1664, %v1663
    %v1815 = vpack.c.b16 %v1666, %v1665
    %v1816 = vpack.c.b16 %v1668, %v1667
    %v1817 = vpack.c.b16 %v1670, %v1669
    %v1818 = vpack.c.b16 %v1672, %v1671
    %v1819 = vpack.c.b16 %v1674, %v1673
    %v1820 = vpack.c.b16 %v1676, %v1675
    %v1821 = vpack.c.b16 %v1678, %v1677
    %v1822 = vpack.c.b16 %v1680, %v1679
    %v1823 = vpack.c.b16 %v1682, %v1681
    %v1824 = vpack.c.b16 %v1684, %v1683
    %v1825 = vpack.c.b16 %v1686, %v1685
    %v1826 = vpack.c.b16 %v1688, %v1687
    %v1827 = vpack.c.b16 %v1690, %v1689
    %v1828 = vpack.c.b16 %v1692, %v1691
    %v1829 = vpack.c.b16 %v1694, %v1693
    %v1830 = vpack.c.b16 %v1696, %v1695
    %v1831 = vpack.c.b16 %v1698, %v1697
    %v1832 = vpack.c.b16 %v1700, %v1699
    %v1833 = vpack.c.b16 %v1702, %v1701
    %v1834 = vpack.c.b16 %v1704, %v1703
    %v1835 = vpack.c.b16 %v1706, %v1705
    %v1836 = vpack.c.b16 %v1708, %v1707
    %1965 = vmatprep.subr.bf16.mxu0 0
    %1966 = vmatpush1.bf16.msra.mxu0 %v1709
    %1967 = vmatprep.subr.bf16.mxu0 0
    %1968 = vmatpush1.bf16.msra.mxu0 %v1710
    %1969 = vmatprep.subr.bf16.mxu0 0
    %1970 = vmatpush1.bf16.msra.mxu0 %v1711
    %1971 = vmatprep.subr.bf16.mxu0 0
    %1972 = vmatpush1.bf16.msra.mxu0 %v1712
    %1973 = vmatprep.subr.bf16.mxu0 0
    %1974 = vmatpush1.bf16.msra.mxu0 %v1713
    %1975 = vmatprep.subr.bf16.mxu0 0
    %1976 = vmatpush1.bf16.msra.mxu0 %v1714
    %1977 = vmatprep.subr.bf16.mxu0 0
    %1978 = vmatpush1.bf16.msra.mxu0 %v1715
    %1979 = vmatprep.subr.bf16.mxu0 0
    %1980 = vmatpush1.bf16.msra.mxu0 %v1716
    %1981 = vmatprep.subr.bf16.mxu0 0
    %1982 = vmatpush1.bf16.msra.mxu0 %v1717
    %1983 = vmatprep.subr.bf16.mxu0 0
    %1984 = vmatpush1.bf16.msra.mxu0 %v1718
    %1985 = vmatprep.subr.bf16.mxu0 0
    %1986 = vmatpush1.bf16.msra.mxu0 %v1719
    %1987 = vmatprep.subr.bf16.mxu0 0
    %1988 = vmatpush1.bf16.msra.mxu0 %v1720
    %1989 = vmatprep.subr.bf16.mxu0 0
    %1990 = vmatpush1.bf16.msra.mxu0 %v1721
    %1991 = vmatprep.subr.bf16.mxu0 0
    %1992 = vmatpush1.bf16.msra.mxu0 %v1722
    %1993 = vmatprep.subr.bf16.mxu0 0
    %1994 = vmatpush1.bf16.msra.mxu0 %v1723
    %1995 = vmatprep.subr.bf16.mxu0 0
    %1996 = vmatpush1.bf16.msra.mxu0 %v1724
    %1997 = vmatprep.mubr.bf16.mxu0 %v922
    %1998 = vmatmul.mubr.bf16.gmra.mrb[0].mxu0 %v921
    %v1999 = vpop.f32.mrb[0].mxu0
    %v2000 = vadd.f32 %v1196, %v1999
    %v2001 = vpop.f32.mrb[0].mxu0
    %v2002 = vpop.f32.mrb[0].mxu0
    %v2003 = vadd.f32 %v1196, %v2002
    %v2004 = vpop.f32.mrb[0].mxu0
    %2005 = vdwg.mxu0
    %2006 = vmatprep.subr.bf16.mxu0 0
    %2007 = vmatpush1.bf16.msra.mxu0 %v1725
    %2008 = vmatprep.subr.bf16.mxu0 0
    %2009 = vmatpush1.bf16.msra.mxu0 %v1726
    %2010 = vmatprep.subr.bf16.mxu0 0
    %2011 = vmatpush1.bf16.msra.mxu0 %v1727
    %2012 = vmatprep.subr.bf16.mxu0 0
    %2013 = vmatpush1.bf16.msra.mxu0 %v1728
    %2014 = vmatprep.subr.bf16.mxu0 0
    %2015 = vmatpush1.bf16.msra.mxu0 %v1729
    %2016 = vmatprep.subr.bf16.mxu0 0
    %2017 = vmatpush1.bf16.msra.mxu0 %v1730
    %2018 = vmatprep.subr.bf16.mxu0 0
    %2019 = vmatpush1.bf16.msra.mxu0 %v1731
    %2020 = vmatprep.subr.bf16.mxu0 0
    %2021 = vmatpush1.bf16.msra.mxu0 %v1732
    %2022 = vmatprep.subr.bf16.mxu0 0
    %2023 = vmatpush1.bf16.msra.mxu0 %v1733
    %2024 = vmatprep.subr.bf16.mxu0 0
    %2025 = vmatpush1.bf16.msra.mxu0 %v1734
    %2026 = vmatprep.subr.bf16.mxu0 0
    %2027 = vmatpush1.bf16.msra.mxu0 %v1735
    %2028 = vmatprep.subr.bf16.mxu0 0
    %2029 = vmatpush1.bf16.msra.mxu0 %v1736
    %2030 = vmatprep.subr.bf16.mxu0 0
    %2031 = vmatpush1.bf16.msra.mxu0 %v1737
    %2032 = vmatprep.subr.bf16.mxu0 0
    %2033 = vmatpush1.bf16.msra.mxu0 %v1738
    %2034 = vmatprep.subr.bf16.mxu0 0
    %2035 = vmatpush1.bf16.msra.mxu0 %v1739
    %2036 = vmatprep.subr.bf16.mxu0 0
    %2037 = vmatpush1.bf16.msra.mxu0 %v1740
    %2038 = vmatprep.mubr.bf16.mxu0 %v924
    %2039 = vmatmul.mubr.bf16.gmra.mrb[0].mxu0 %v923
    %v2040 = vpop.f32.mrb[0].mxu0
    %v2041 = vadd.f32 %v2000, %v2040
    %v2042 = vpop.f32.mrb[0].mxu0
    %v2043 = vpop.f32.mrb[0].mxu0
    %v2044 = vadd.f32 %v2003, %v2043
    %v2045 = vpop.f32.mrb[0].mxu0
    %2046 = vdwg.mxu0
    %2047 = vmatprep.subr.bf16.mxu0 0
    %2048 = vmatpush1.bf16.msra.mxu0 %v1741
    %2049 = vmatprep.subr.bf16.mxu0 0
    %2050 = vmatpush1.bf16.msra.mxu0 %v1742
    %2051 = vmatprep.subr.bf16.mxu0 0
    %2052 = vmatpush1.bf16.msra.mxu0 %v1743
    %2053 = vmatprep.subr.bf16.mxu0 0
    %2054 = vmatpush1.bf16.msra.mxu0 %v1744
    %2055 = vmatprep.subr.bf16.mxu0 0
    %2056 = vmatpush1.bf16.msra.mxu0 %v1745
    %2057 = vmatprep.subr.bf16.mxu0 0
    %2058 = vmatpush1.bf16.msra.mxu0 %v1746
    %2059 = vmatprep.subr.bf16.mxu0 0
    %2060 = vmatpush1.bf16.msra.mxu0 %v1747
    %2061 = vmatprep.subr.bf16.mxu0 0
    %2062 = vmatpush1.bf16.msra.mxu0 %v1748
    %2063 = vmatprep.subr.bf16.mxu0 0
    %2064 = vmatpush1.bf16.msra.mxu0 %v1749
    %2065 = vmatprep.subr.bf16.mxu0 0
    %2066 = vmatpush1.bf16.msra.mxu0 %v1750
    %2067 = vmatprep.subr.bf16.mxu0 0
    %2068 = vmatpush1.bf16.msra.mxu0 %v1751
    %2069 = vmatprep.subr.bf16.mxu0 0
    %2070 = vmatpush1.bf16.msra.mxu0 %v1752
    %2071 = vmatprep.subr.bf16.mxu0 0
    %2072 = vmatpush1.bf16.msra.mxu0 %v1753
    %2073 = vmatprep.subr.bf16.mxu0 0
    %2074 = vmatpush1.bf16.msra.mxu0 %v1754
    %2075 = vmatprep.subr.bf16.mxu0 0
    %2076 = vmatpush1.bf16.msra.mxu0 %v1755
    %2077 = vmatprep.subr.bf16.mxu0 0
    %2078 = vmatpush1.bf16.msra.mxu0 %v1756
    %2079 = vmatprep.mubr.bf16.mxu0 %v926
    %2080 = vmatmul.mubr.bf16.gmra.mrb[0].mxu0 %v925
    %v2081 = vpop.f32.mrb[0].mxu0
    %v2082 = vadd.f32 %v2041, %v2081
    %v2083 = vpop.f32.mrb[0].mxu0
    %v2084 = vpop.f32.mrb[0].mxu0
    %v2085 = vadd.f32 %v2044, %v2084
    %v2086 = vpop.f32.mrb[0].mxu0
    %2087 = vdwg.mxu0
    %2088 = vmatprep.subr.bf16.mxu0 0
    %2089 = vmatpush1.bf16.msra.mxu0 %v1757
    %2090 = vmatprep.subr.bf16.mxu0 0
    %2091 = vmatpush1.bf16.msra.mxu0 %v1758
    %2092 = vmatprep.subr.bf16.mxu0 0
    %2093 = vmatpush1.bf16.msra.mxu0 %v1759
    %2094 = vmatprep.subr.bf16.mxu0 0
    %2095 = vmatpush1.bf16.msra.mxu0 %v1760
    %2096 = vmatprep.subr.bf16.mxu0 0
    %2097 = vmatpush1.bf16.msra.mxu0 %v1761
    %2098 = vmatprep.subr.bf16.mxu0 0
    %2099 = vmatpush1.bf16.msra.mxu0 %v1762
    %2100 = vmatprep.subr.bf16.mxu0 0
    %2101 = vmatpush1.bf16.msra.mxu0 %v1763
    %2102 = vmatprep.subr.bf16.mxu0 0
    %2103 = vmatpush1.bf16.msra.mxu0 %v1764
    %2104 = vmatprep.subr.bf16.mxu0 0
    %2105 = vmatpush1.bf16.msra.mxu0 %v1765
    %2106 = vmatprep.subr.bf16.mxu0 0
    %2107 = vmatpush1.bf16.msra.mxu0 %v1766
    %2108 = vmatprep.subr.bf16.mxu0 0
    %2109 = vmatpush1.bf16.msra.mxu0 %v1767
    %2110 = vmatprep.subr.bf16.mxu0 0
    %2111 = vmatpush1.bf16.msra.mxu0 %v1768
    %2112 = vmatprep.subr.bf16.mxu0 0
    %2113 = vmatpush1.bf16.msra.mxu0 %v1769
    %2114 = vmatprep.subr.bf16.mxu0 0
    %2115 = vmatpush1.bf16.msra.mxu0 %v1770
    %2116 = vmatprep.subr.bf16.mxu0 0
    %2117 = vmatpush1.bf16.msra.mxu0 %v1771
    %2118 = vmatprep.subr.bf16.mxu0 0
    %2119 = vmatpush1.bf16.msra.mxu0 %v1772
    %2120 = vmatprep.mubr.bf16.mxu0 %v928
    %2121 = vmatmul.mubr.bf16.gmra.mrb[0].mxu0 %v927
    %v2122 = vpop.f32.mrb[0].mxu0
    %v2123 = vadd.f32 %v2082, %v2122
    %v2124 = vpop.f32.mrb[0].mxu0
    %v2125 = vpop.f32.mrb[0].mxu0
    %v2126 = vadd.f32 %v2085, %v2125
    %v2127 = vpop.f32.mrb[0].mxu0
    %2128 = vdwg.mxu0
    %2129 = vmatprep.subr.bf16.mxu0 0
    %2130 = vmatpush1.bf16.msra.mxu0 %v1773
    %2131 = vmatprep.subr.bf16.mxu0 0
    %2132 = vmatpush1.bf16.msra.mxu0 %v1774
    %2133 = vmatprep.subr.bf16.mxu0 0
    %2134 = vmatpush1.bf16.msra.mxu0 %v1775
    %2135 = vmatprep.subr.bf16.mxu0 0
    %2136 = vmatpush1.bf16.msra.mxu0 %v1776
    %2137 = vmatprep.subr.bf16.mxu0 0
    %2138 = vmatpush1.bf16.msra.mxu0 %v1777
    %2139 = vmatprep.subr.bf16.mxu0 0
    %2140 = vmatpush1.bf16.msra.mxu0 %v1778
    %2141 = vmatprep.subr.bf16.mxu0 0
    %2142 = vmatpush1.bf16.msra.mxu0 %v1779
    %2143 = vmatprep.subr.bf16.mxu0 0
    %2144 = vmatpush1.bf16.msra.mxu0 %v1780
    %2145 = vmatprep.subr.bf16.mxu0 0
    %2146 = vmatpush1.bf16.msra.mxu0 %v1781
    %2147 = vmatprep.subr.bf16.mxu0 0
    %2148 = vmatpush1.bf16.msra.mxu0 %v1782
    %2149 = vmatprep.subr.bf16.mxu0 0
    %2150 = vmatpush1.bf16.msra.mxu0 %v1783
    %2151 = vmatprep.subr.bf16.mxu0 0
    %2152 = vmatpush1.bf16.msra.mxu0 %v1784
    %2153 = vmatprep.subr.bf16.mxu0 0
    %2154 = vmatpush1.bf16.msra.mxu0 %v1785
    %2155 = vmatprep.subr.bf16.mxu0 0
    %2156 = vmatpush1.bf16.msra.mxu0 %v1786
    %2157 = vmatprep.subr.bf16.mxu0 0
    %2158 = vmatpush1.bf16.msra.mxu0 %v1787
    %2159 = vmatprep.subr.bf16.mxu0 0
    %2160 = vmatpush1.bf16.msra.mxu0 %v1788
    %2161 = vmatprep.mubr.bf16.mxu0 %v930
    %2162 = vmatmul.mubr.bf16.gmra.mrb[0].mxu0 %v929
    %v2163 = vpop.f32.mrb[0].mxu0
    %v2164 = vadd.f32 %v2123, %v2163
    %v2165 = vpop.f32.mrb[0].mxu0
    %v2166 = vpop.f32.mrb[0].mxu0
    %v2167 = vadd.f32 %v2126, %v2166
    %v2168 = vpop.f32.mrb[0].mxu0
    %2169 = vdwg.mxu0
    %2170 = vmatprep.subr.bf16.mxu0 0
    %2171 = vmatpush1.bf16.msra.mxu0 %v1789
    %2172 = vmatprep.subr.bf16.mxu0 0
    %2173 = vmatpush1.bf16.msra.mxu0 %v1790
    %2174 = vmatprep.subr.bf16.mxu0 0
    %2175 = vmatpush1.bf16.msra.mxu0 %v1791
    %2176 = vmatprep.subr.bf16.mxu0 0
    %2177 = vmatpush1.bf16.msra.mxu0 %v1792
    %2178 = vmatprep.subr.bf16.mxu0 0
    %2179 = vmatpush1.bf16.msra.mxu0 %v1793
    %2180 = vmatprep.subr.bf16.mxu0 0
    %2181 = vmatpush1.bf16.msra.mxu0 %v1794
    %2182 = vmatprep.subr.bf16.mxu0 0
    %2183 = vmatpush1.bf16.msra.mxu0 %v1795
    %2184 = vmatprep.subr.bf16.mxu0 0
    %2185 = vmatpush1.bf16.msra.mxu0 %v1796
    %2186 = vmatprep.subr.bf16.mxu0 0
    %2187 = vmatpush1.bf16.msra.mxu0 %v1797
    %2188 = vmatprep.subr.bf16.mxu0 0
    %2189 = vmatpush1.bf16.msra.mxu0 %v1798
    %2190 = vmatprep.subr.bf16.mxu0 0
    %2191 = vmatpush1.bf16.msra.mxu0 %v1799
    %2192 = vmatprep.subr.bf16.mxu0 0
    %2193 = vmatpush1.bf16.msra.mxu0 %v1800
    %2194 = vmatprep.subr.bf16.mxu0 0
    %2195 = vmatpush1.bf16.msra.mxu0 %v1801
    %2196 = vmatprep.subr.bf16.mxu0 0
    %2197 = vmatpush1.bf16.msra.mxu0 %v1802
    %2198 = vmatprep.subr.bf16.mxu0 0
    %2199 = vmatpush1.bf16.msra.mxu0 %v1803
    %2200 = vmatprep.subr.bf16.mxu0 0
    %2201 = vmatpush1.bf16.msra.mxu0 %v1804
    %2202 = vmatprep.mubr.bf16.mxu0 %v932
    %2203 = vmatmul.mubr.bf16.gmra.mrb[0].mxu0 %v931
    %v2204 = vpop.f32.mrb[0].mxu0
    %v2205 = vadd.f32 %v2164, %v2204
    %v2206 = vpop.f32.mrb[0].mxu0
    %v2207 = vpop.f32.mrb[0].mxu0
    %v2208 = vadd.f32 %v2167, %v2207
    %v2209 = vpop.f32.mrb[0].mxu0
    %2210 = vdwg.mxu0
    %2211 = vmatprep.subr.bf16.mxu0 0
    %2212 = vmatpush1.bf16.msra.mxu0 %v1805
    %2213 = vmatprep.subr.bf16.mxu0 0
    %2214 = vmatpush1.bf16.msra.mxu0 %v1806
    %2215 = vmatprep.subr.bf16.mxu0 0
    %2216 = vmatpush1.bf16.msra.mxu0 %v1807
    %2217 = vmatprep.subr.bf16.mxu0 0
    %2218 = vmatpush1.bf16.msra.mxu0 %v1808
    %2219 = vmatprep.subr.bf16.mxu0 0
    %2220 = vmatpush1.bf16.msra.mxu0 %v1809
    %2221 = vmatprep.subr.bf16.mxu0 0
    %2222 = vmatpush1.bf16.msra.mxu0 %v1810
    %2223 = vmatprep.subr.bf16.mxu0 0
    %2224 = vmatpush1.bf16.msra.mxu0 %v1811
    %2225 = vmatprep.subr.bf16.mxu0 0
    %2226 = vmatpush1.bf16.msra.mxu0 %v1812
    %2227 = vmatprep.subr.bf16.mxu0 0
    %2228 = vmatpush1.bf16.msra.mxu0 %v1813
    %2229 = vmatprep.subr.bf16.mxu0 0
    %2230 = vmatpush1.bf16.msra.mxu0 %v1814
    %2231 = vmatprep.subr.bf16.mxu0 0
    %2232 = vmatpush1.bf16.msra.mxu0 %v1815
    %2233 = vmatprep.subr.bf16.mxu0 0
    %2234 = vmatpush1.bf16.msra.mxu0 %v1816
    %2235 = vmatprep.subr.bf16.mxu0 0
    %2236 = vmatpush1.bf16.msra.mxu0 %v1817
    %2237 = vmatprep.subr.bf16.mxu0 0
    %2238 = vmatpush1.bf16.msra.mxu0 %v1818
    %2239 = vmatprep.subr.bf16.mxu0 0
    %2240 = vmatpush1.bf16.msra.mxu0 %v1819
    %2241 = vmatprep.subr.bf16.mxu0 0
    %2242 = vmatpush1.bf16.msra.mxu0 %v1820
    %2243 = vmatprep.mubr.bf16.mxu0 %v934
    %2244 = vmatmul.mubr.bf16.gmra.mrb[0].mxu0 %v933
    %v2245 = vpop.f32.mrb[0].mxu0
    %v2246 = vadd.f32 %v2205, %v2245
    %v2247 = vpop.f32.mrb[0].mxu0
    %v2248 = vpop.f32.mrb[0].mxu0
    %v2249 = vadd.f32 %v2208, %v2248
    %v2250 = vpop.f32.mrb[0].mxu0
    %2251 = vdwg.mxu0
    %2252 = vmatprep.subr.bf16.mxu0 0
    %2253 = vmatpush1.bf16.msra.mxu0 %v1821
    %2254 = vmatprep.subr.bf16.mxu0 0
    %2255 = vmatpush1.bf16.msra.mxu0 %v1822
    %2256 = vmatprep.subr.bf16.mxu0 0
    %2257 = vmatpush1.bf16.msra.mxu0 %v1823
    %2258 = vmatprep.subr.bf16.mxu0 0
    %2259 = vmatpush1.bf16.msra.mxu0 %v1824
    %2260 = vmatprep.subr.bf16.mxu0 0
    %2261 = vmatpush1.bf16.msra.mxu0 %v1825
    %2262 = vmatprep.subr.bf16.mxu0 0
    %2263 = vmatpush1.bf16.msra.mxu0 %v1826
    %2264 = vmatprep.subr.bf16.mxu0 0
    %2265 = vmatpush1.bf16.msra.mxu0 %v1827
    %2266 = vmatprep.subr.bf16.mxu0 0
    %2267 = vmatpush1.bf16.msra.mxu0 %v1828
    %2268 = vmatprep.subr.bf16.mxu0 0
    %2269 = vmatpush1.bf16.msra.mxu0 %v1829
    %2270 = vmatprep.subr.bf16.mxu0 0
    %2271 = vmatpush1.bf16.msra.mxu0 %v1830
    %2272 = vmatprep.subr.bf16.mxu0 0
    %2273 = vmatpush1.bf16.msra.mxu0 %v1831
    %2274 = vmatprep.subr.bf16.mxu0 0
    %2275 = vmatpush1.bf16.msra.mxu0 %v1832
    %2276 = vmatprep.subr.bf16.mxu0 0
    %2277 = vmatpush1.bf16.msra.mxu0 %v1833
    %2278 = vmatprep.subr.bf16.mxu0 0
    %2279 = vmatpush1.bf16.msra.mxu0 %v1834
    %2280 = vmatprep.subr.bf16.mxu0 0
    %2281 = vmatpush1.bf16.msra.mxu0 %v1835
    %2282 = vmatprep.subr.bf16.mxu0 0
    %2283 = vmatpush1.bf16.msra.mxu0 %v1836
    %2284 = vmatprep.mubr.bf16.mxu0 %v936
    %2285 = vmatmul.mubr.bf16.gmra.mrb[0].mxu0 %v935
    %v2286 = vpop.f32.mrb[0].mxu0
    %v2287 = vadd.f32 %v2246, %v2286
    %v2288 = vpop.f32.mrb[0].mxu0
    %v2289 = vpop.f32.mrb[0].mxu0
    %v2290 = vadd.f32 %v2249, %v2289
    %v2291 = vpop.f32.mrb[0].mxu0
    %2292 = vdwg.mxu0
    %v2293 = vadd.f32 %v133, %v2287
    %v2294 = vadd.f32 %v134, %v2290
    %v2295 = vsel %vm95, %v2293, 0.0
    %2296 = vadd.xlane.f32.xlu0 %v2295
    %v2297 = vpop.xlane.xlu0 %2296
    %v2298 = vsel %vm95, %v2294, 0.0
    %2299 = vadd.xlane.f32.xlu0 %v2298
    %v2300 = vpop.xlane.xlu0 %2299
    %v2301 = vmul.f32 %v2297, %v102
    %v2302 = vmul.f32 %v2300, %v102
    %v2303 = vsub.f32 %v2293, %v2301
    %v2304 = vsub.f32 %v2294, %v2302
    %v2305 = vmul.f32 %v2303, %v2303
    %v2306 = vmul.f32 %v2304, %v2304
    %v2307 = vsel %vm95, %v2305, 0.0
    %2308 = vadd.xlane.f32.xlu0 %v2307
    %v2309 = vpop.xlane.xlu0 %2308
    %v2310 = vsel %vm95, %v2306, 0.0
    %2311 = vadd.xlane.f32.xlu0 %v2310
    %v2312 = vpop.xlane.xlu0 %2311
    %v2313 = vmul.f32 %v2309, %v102
    %v2314 = vmul.f32 %v2312, %v102
    %v2315 = vadd.f32 %v2313, 1e-05
    %v2316 = vadd.f32 %v2314, 1e-05
    %v2317 = vrsqrt.pop %v2315
    %v2318 = vrsqrt.pop %v2316
    %v2319 = vmul.f32 %v2303, %v2317
    %v2320 = vmul.f32 %v2304, %v2318
    %v2321 = vlaneseq
    %v2322 = vshrl.u32 %v2321, 7
    %v2323 = vsub.s32 4, %v2322
    %v2324 = vrot.slane %v34, %v2323
    %v2325 = vmul.f32 %v2319, %v2324
    %v2326 = vmul.f32 %v2320, %v2324
    %v2327 = vlaneseq
    %v2328 = vshrl.u32 %v2327, 7
    %v2329 = vsub.s32 5, %v2328
    %v2330 = vrot.slane %v34, %v2329
    %v2331 = vadd.f32 %v2325, %v2330
    %v2332 = vadd.f32 %v2326, %v2330
    %v2333 = vpack.c.bf16 %v2332, %v2331
    %v2334 = vld [vmem:[%s5] sm:$0xf]
    %v2335 = vld [vmem:[%s5 + $0x4] sm:$0xf]
    %v2336 = vld [vmem:[%s5 + $0x8] sm:$0xf]
    %v2337 = vld [vmem:[%s5 + $0xc] sm:$0xf]
    %v2338 = vlaneseq
    %v2339 = vshrl.u32 %v2338, 7
    %v2340 = vsub.s32 6, %v2339
    %v2341 = vrot.slane %v34, %v2340
    %v2346 = vunpack.c.l.b16 %v2334
    %v2347 = vunpack.c.l.b16 %v2335
    %v2348 = vunpack.c.l.b16 %v2336
    %v2349 = vunpack.c.l.b16 %v2337
    %v2350 = vpack.c.b16 %v2347, %v2346
    %v2351 = vpack.c.b16 %v2349, %v2348
    %v2355 = vsel %vm95, %v2333, 0
    %2357 = vmatprep.subr.bf16.mxu0 0
    %2358 = vmatpush1.bf16.msra.mxu0 %v2350
    %2359 = vmatprep.subr.bf16.mxu0 0
    %2360 = vmatpush1.bf16.msra.mxu0 %v2351
    %2361 = vmatprep.subr.bf16.mxu0 0
    %2362 = vmatpush1.bf16.msra.mxu0 0
    %2363 = vmatprep.subr.bf16.mxu0 0
    %2364 = vmatpush1.bf16.msra.mxu0 0
    %2365 = vmatprep.subr.bf16.mxu0 0
    %2366 = vmatpush1.bf16.msra.mxu0 0
    %2367 = vmatprep.subr.bf16.mxu0 0
    %2368 = vmatpush1.bf16.msra.mxu0 0
    %2369 = vmatprep.subr.bf16.mxu0 0
    %2370 = vmatpush1.bf16.msra.mxu0 0
    %2371 = vmatprep.subr.bf16.mxu0 0
    %2372 = vmatpush1.bf16.msra.mxu0 0
    %2373 = vmatprep.subr.bf16.mxu0 0
    %2374 = vmatpush1.bf16.msra.mxu0 0
    %2375 = vmatprep.subr.bf16.mxu0 0
    %2376 = vmatpush1.bf16.msra.mxu0 0
    %2377 = vmatprep.subr.bf16.mxu0 0
    %2378 = vmatpush1.bf16.msra.mxu0 0
    %2379 = vmatprep.subr.bf16.mxu0 0
    %2380 = vmatpush1.bf16.msra.mxu0 0
    %2381 = vmatprep.subr.bf16.mxu0 0
    %2382 = vmatpush1.bf16.msra.mxu0 0
    %2383 = vmatprep.subr.bf16.mxu0 0
    %2384 = vmatpush1.bf16.msra.mxu0 0
    %2385 = vmatprep.subr.bf16.mxu0 0
    %2386 = vmatpush1.bf16.msra.mxu0 0
    %2387 = vmatprep.subr.bf16.mxu0 0
    %2388 = vmatpush1.bf16.msra.mxu0 0
    %2389 = vmatprep.mubr.bf16.mxu0 0
    %2390 = vmatmul.mubr.bf16.gmra.mrb[0].mxu0 %v2355
    %v2391 = vpop.f32.mrb[0].mxu0
    %v2392 = vadd.f32 %v2341, %v2391
    %v2393 = vpop.f32.mrb[0].mxu0
    %v2394 = vpop.f32.mrb[0].mxu0
    %v2395 = vadd.f32 %v2341, %v2394
    %v2396 = vpop.f32.mrb[0].mxu0
    %2397 = vdwg.mxu0
    %v2398 = vmax.f32 %v2392, 0.0
    %v2399 = vmax.f32 %v2395, 0.0
    %v2400 = vpack.c.bf16 %v2399, %v2398
    %v2401 = vld [vmem:[%s6] sm:$0xf]
    %v2402 = vld [vmem:[%s6 + $0x4] sm:$0xf]
    %v2403 = vld [vmem:[%s6 + $0x8] sm:$0xf]
    %v2404 = vld [vmem:[%s6 + $0xc] sm:$0xf]
    %v2405 = vld [vmem:[%s7] sm:$0x1]
    %v2407 = vlaneseq
    %v2408 = vshrl.u32 %v2407, 7
    %v2409 = vsub.s32 0, %v2408
    %v2410 = vrot.slane %v2405, %v2409
    %v2416 = vunpack.c.l.b16 %v2401
    %v2417 = vunpack.c.l.b16 %v2402
    %v2418 = vunpack.c.l.b16 %v2403
    %v2419 = vunpack.c.l.b16 %v2404
    %v2420 = vpack.c.b16 %v2417, %v2416
    %v2421 = vpack.c.b16 %v2419, %v2418
    %v2425 = vsel %vm95, %v2400, 0
    %2427 = vmatprep.subr.bf16.mxu0 0
    %2428 = vmatpush1.bf16.msra.mxu0 %v2420
    %2429 = vmatprep.subr.bf16.mxu0 0
    %2430 = vmatpush1.bf16.msra.mxu0 %v2421
    %2431 = vmatprep.subr.bf16.mxu0 0
    %2432 = vmatpush1.bf16.msra.mxu0 0
    %2433 = vmatprep.subr.bf16.mxu0 0
    %2434 = vmatpush1.bf16.msra.mxu0 0
    %2435 = vmatprep.subr.bf16.mxu0 0
    %2436 = vmatpush1.bf16.msra.mxu0 0
    %2437 = vmatprep.subr.bf16.mxu0 0
    %2438 = vmatpush1.bf16.msra.mxu0 0
    %2439 = vmatprep.subr.bf16.mxu0 0
    %2440 = vmatpush1.bf16.msra.mxu0 0
    %2441 = vmatprep.subr.bf16.mxu0 0
    %2442 = vmatpush1.bf16.msra.mxu0 0
    %2443 = vmatprep.subr.bf16.mxu0 0
    %2444 = vmatpush1.bf16.msra.mxu0 0
    %2445 = vmatprep.subr.bf16.mxu0 0
    %2446 = vmatpush1.bf16.msra.mxu0 0
    %2447 = vmatprep.subr.bf16.mxu0 0
    %2448 = vmatpush1.bf16.msra.mxu0 0
    %2449 = vmatprep.subr.bf16.mxu0 0
    %2450 = vmatpush1.bf16.msra.mxu0 0
    %2451 = vmatprep.subr.bf16.mxu0 0
    %2452 = vmatpush1.bf16.msra.mxu0 0
    %2453 = vmatprep.subr.bf16.mxu0 0
    %2454 = vmatpush1.bf16.msra.mxu0 0
    %2455 = vmatprep.subr.bf16.mxu0 0
    %2456 = vmatpush1.bf16.msra.mxu0 0
    %2457 = vmatprep.subr.bf16.mxu0 0
    %2458 = vmatpush1.bf16.msra.mxu0 0
    %2459 = vmatprep.mubr.bf16.mxu0 0
    %2460 = vmatmul.mubr.bf16.gmra.mrb[0].mxu0 %v2425
    %v2461 = vpop.f32.mrb[0].mxu0
    %v2462 = vadd.f32 %v2410, %v2461
    %v2463 = vpop.f32.mrb[0].mxu0
    %v2464 = vpop.f32.mrb[0].mxu0
    %v2465 = vadd.f32 %v2410, %v2464
    %v2466 = vpop.f32.mrb[0].mxu0
    %2467 = vdwg.mxu0
    %2468 = vst [vmem:[#allocation2] sm:$0xff] %v2462
    %2469 = vst [vmem:[#allocation2 + $0x8] sm:$0xff] %v2465
    // Predicated region
    $region38: #{tpu_custom_call.1} parent=1 // pred_check
      _
    $region39: #{tpu_custom_call.1} parent=1 // pred_check_branch
      %2471 = sbr.rel (0) target = $region41
    $region40: #{tpu_custom_call.1} parent=1 // pred_region
      %s2473 = ssub.s32 256, 256
      %2474 = vsyncadd [#allocation3], %s2473
      %s2475 = sshll.u32 [#allocation2], 4
      %s2476 = int_to_ptr.vmem [resolvable:$true] %s2475
      %2481 = dma.vmem_to_hbm [thread:$0]  %s2476, 256, %s9, [#allocation3], 128, 128, 8
    $region41: #{tpu_custom_call.1} parent=1 // pred_fallthru
      _
    // Predicated region
    $region42: #{tpu_custom_call.1} parent=1 // pred_check
      _
    $region43: #{tpu_custom_call.1} parent=1 // pred_check_branch
      %2483 = sbr.rel (0) target = $region45
    $region44: #{tpu_custom_call.1} parent=1 // pred_region
      %2484 = dma.done [#allocation3], 256
    $region45: #{tpu_custom_call.1} parent=1 // pred_fallthru
      _
    %2485 = vsyncpa [#allocation3], 1

</llo_original>
